<compile_context>
chip_gen: v7x
topology: tpu7x:2x2x1
jax: 0.10.0
libtpu: 0.0.40
codegen_flags: <defaults>
</compile_context>

<pallas_src>
import functools
import math

import jax
import jax.numpy as jnp
import numpy as np
from jax.experimental import pallas as pl
from jax.experimental.pallas import tpu as pltpu


# ---------------------------------------------------------------------------
# Fused kernel: grid=(num_snapshot,), state carried in VMEM scratch
# ---------------------------------------------------------------------------
def _z_encoder_kernel(feat_ref, a0_ref, w_ref, ln_ref,
                      r_ref, sel_e_ref, sel_o_ref, m_ref,
                      wx_ref, wh_ref, b_ref,
                      adj_ref, ts_ref,
                      z_out_ref, a_out_ref,
                      emb_sc, a_sc,
                      *, n_nodes, d, hidden, t_span, alpha, eps):
    step = pl.program_id(0)

    @pl.when(step == 0)
    def _():
        emb_sc[...] = feat_ref[...]          # snapshot-0 features
        a_sc[...] = a0_ref[...]              # initial attention vector

    a_row = a_sc[...]                        # (1, 2D) carried `a`
    feat = emb_sc[...]                       # (N, D)  carried node embedding

    # ------------------ GraphAttentionLayer_edit ---------------------------
    zfeat = jnp.dot(feat, w_ref[...], preferred_element_type=jnp.float32)   # (N, D)

    # (a_input . a)[i, j] = z_i . a[:D] + z_j . a[D:] = u[i] + v[j]
    u = jnp.sum(zfeat * a_row[:, :d], axis=1, keepdims=True)                # (N, 1)
    v = jax.lax.dot_general(a_row[:, d:], zfeat, (((1,), (1,)), ((), ())),
                            preferred_element_type=jnp.float32)             # (1, N)

    # Vectorised time-encoding term (helper matrices built in the wrapper):
    #   t_term[i,j] = sum_k sin(dt[i,j]*f_k)*a[2k] + cos(dt[i,j]*f_k)*a[2k+1]
    time_end = (step + 1).astype(jnp.float32) * t_span
    dt = time_end - ts_ref[0]                                               # (N, N)
    ph = jnp.dot(dt, r_ref[...], preferred_element_type=jnp.float32)        # (N, N*D)
    rep_ae = jax.lax.dot_general(a_row, sel_e_ref[...], (((1,), (1,)), ((), ())),
                                 preferred_element_type=jnp.float32)        # (1, N*D)
    rep_ao = jax.lax.dot_general(a_row, sel_o_ref[...], (((1,), (1,)), ((), ())),
                                 preferred_element_type=jnp.float32)        # (1, N*D)
    sc = jnp.sin(ph) * rep_ae + jnp.cos(ph) * rep_ao                        # (N, N*D)
    t_term = jnp.dot(sc, m_ref[...], preferred_element_type=jnp.float32)    # (N, N)

    e = u + v + t_term
    e = jnp.where(e >= 0.0, e, alpha * e)                                   # LeakyReLU
    e = jnp.where(adj_ref[0] > 0.0, e, -9e15)                               # edge mask

    mx = jnp.max(e, axis=1, keepdims=True)
    p = jnp.exp(e - mx)
    att = p / jnp.sum(p, axis=1, keepdims=True)
    # TODO(synk): attention dropout (F.dropout) is identity in eval mode.

    temp = jnp.dot(att, zfeat, preferred_element_type=jnp.float32) + zfeat  # residual

    mu = jnp.mean(temp, axis=1, keepdims=True)
    var = jnp.mean((temp - mu) ** 2, axis=1, keepdims=True)
    emb = (temp - mu) * jax.lax.rsqrt(var + eps)
    emb = emb * ln_ref[0:1, :] + ln_ref[1:2, :]                             # LN affine

    z_out_ref[0] = emb            # TODO(synk): pad D to 128 lanes at scale for
    emb_sc[...] = emb             #             unmasked lane-dense stores.

    # -------------- GRUCell on (emb, broadcast a) + fused mean --------------
    h_gates = jnp.dot(a_row, wh_ref[...], preferred_element_type=jnp.float32)  # (1, 4H)
    gates = (jnp.dot(emb, wx_ref[...], preferred_element_type=jnp.float32)
             + h_gates + b_ref[...])                                            # (N, 4H)
    hh = hidden
    rg = jax.nn.sigmoid(gates[:, 0:hh])
    zg = jax.nn.sigmoid(gates[:, hh:2 * hh])
    ng = jnp.tanh(gates[:, 2 * hh:3 * hh] + rg * gates[:, 3 * hh:4 * hh])
    a_next = (1.0 - zg) * ng + zg * a_row            # every hid row equals a_row
    new_a = jnp.sum(a_next, axis=0, keepdims=True) * (1.0 / n_nodes)         # mean

    a_sc[...] = new_a
    a_out_ref[...] = new_a                            # resident; last write wins


# ---------------------------------------------------------------------------
# Host-side parameter packing + wrapper
# ---------------------------------------------------------------------------
def pack_gru_params(params):
    """Split-pack the 12 GRUCell params into W_x (D,4H), W_h (H,4H), b (1,4H).

    Gate column blocks are [r | z | n_x | n_h]; n_x has no hidden contribution
    and n_h has no input contribution (r only scales the hidden candidate
    path), so those cross blocks are zero.  Biases pre-summed where possible.
    """
    wxr, wxz, wxn = params["in2hid_w"]
    whr, whz, whn = params["hid2hid_w"]
    bxr, bxz, bxn = params["in2hid_b"]
    bhr, bhz, bhn = params["hid2hid_b"]
    d_in, hh = wxr.shape
    w_x = jnp.concatenate([wxr, wxz, wxn, jnp.zeros((d_in, hh), jnp.float32)], axis=1)
    w_h = jnp.concatenate([whr, whz, jnp.zeros((hh, hh), jnp.float32), whn], axis=1)
    b = jnp.concatenate([bxr + bhr, bxz + bhz, bxn, bhn]).reshape(1, 4 * hh)
    return w_x, w_h, b


def z_encoder_forward(adj, feature, timestamp, a_init, gat_params, gru_params,
                      *, t_span, alpha=0.05, eps=1e-6):
    S, N, _ = adj.shape
    D = feature.shape[1]
    H = 2 * D

    W = gat_params["W"]
    freq = gat_params["basis_freq"].reshape(1, D)
    ln_gb = jnp.stack([gat_params["ln_gamma"], gat_params["ln_beta"]], axis=0)   # (2, D)

    # Static helper matrices for the vectorised time-encoding term:
    #   R[j, j*D+k] = f_k                 ->  ph = dt @ R
    #   SEL_E[p, 2*(p%D)] = 1 ; SEL_O[p, 2*(p%D)+1] = 1   ->  rep = a @ SEL^T
    #   M[j*D+k, j] = 1                   ->  t_term = (sin*ae + cos*ao) @ M
    eye_n = np.eye(N, dtype=np.float32)
    blockdiag_row = jnp.asarray(np.kron(eye_n, np.ones((1, D), np.float32)))    # (N, N*D)
    r_mat = blockdiag_row * jnp.tile(freq, (1, N))                              # (N, N*D)
    m_mat = jnp.asarray(np.kron(eye_n, np.ones((D, 1), np.float32)))            # (N*D, N)
    sel_e = np.zeros((D, 2 * D), np.float32)
    sel_o = np.zeros((D, 2 * D), np.float32)
    sel_e[np.arange(D), 2 * np.arange(D)] = 1.0
    sel_o[np.arange(D), 2 * np.arange(D) + 1] = 1.0
    sel_e = jnp.asarray(np.tile(sel_e, (N, 1)))                                 # (N*D, 2D)
    sel_o = jnp.asarray(np.tile(sel_o, (N, 1)))                                 # (N*D, 2D)

    w_x, w_h, b = pack_gru_params(gru_params)
    a0 = a_init.reshape(1, H)

    kernel = functools.partial(_z_encoder_kernel, n_nodes=N, d=D, hidden=H,
                               t_span=float(t_span), alpha=alpha, eps=eps)

    const2 = lambda s: (0, 0)
    snap3 = lambda s: (s, 0, 0)

    # TODO(synk): at real graph sizes, tile nodes with an extra "parallel" grid
    # axis (v7x 2 TCs), budget adj/timestamp blocks against v7x's 64 MiB VMEM
    # (vmem_limit_bytes), and store weights in bf16 for v6e/v7x MXU throughput.
    z_all, a_last = pl.pallas_call(
        kernel,
        out_shape=(jax.ShapeDtypeStruct((S, N, D), jnp.float32),
                   jax.ShapeDtypeStruct((1, H), jnp.float32)),
        grid_spec=pltpu.PrefetchScalarGridSpec(
            num_scalar_prefetch=0,
            grid=(S,),
            in_specs=[
                pl.BlockSpec((N, D), const2),          # feature (snapshot-0 emb)
                pl.BlockSpec((1, H), const2),          # initial a
                pl.BlockSpec((D, D), const2),          # GAT W
                pl.BlockSpec((2, D), const2),          # LayerNorm gamma/beta slab
                pl.BlockSpec((N, N * D), const2),      # R   (time freq, block-diag)
                pl.BlockSpec((N * D, 2 * D), const2),  # SEL_E
                pl.BlockSpec((N * D, 2 * D), const2),  # SEL_O
                pl.BlockSpec((N * D, N), const2),      # M   (block indicator)
                pl.BlockSpec((D, 4 * H), const2),      # GRU W_x
                pl.BlockSpec((H, 4 * H), const2),      # GRU W_h
                pl.BlockSpec((1, 4 * H), const2),      # GRU bias
                pl.BlockSpec((1, N, N), snap3),        # adj[s]
                pl.BlockSpec((1, N, N), snap3),        # timestamp[s]
            ],
            out_specs=[
                pl.BlockSpec((1, N, D), snap3),        # z_emb[s]
                pl.BlockSpec((1, H), const2),          # final a
            ],
            scratch_shapes=[pltpu.VMEM((N, D), jnp.float32),   # carried emb
                            pltpu.VMEM((1, H), jnp.float32)],  # carried a
        ),
        compiler_params=pltpu.CompilerParams(
            dimension_semantics=("arbitrary",)),       # snapshot axis = recurrence
    )(feature, a0, W, ln_gb, r_mat, sel_e, sel_o, m_mat, w_x, w_h, b,
      adj, timestamp)

    return z_all, a_last.T                             # (S, N, D), (H, 1)


# ---------------------------------------------------------------------------
# Pure-JAX reference mirroring the PyTorch modules (eval-mode dropout)
# ---------------------------------------------------------------------------
_HI = jax.lax.Precision.HIGHEST


def _time_encode_ref(ts, basis_freq):
    map_ts = ts[:, :, None] * basis_freq[None, None, :]
    N1, N2 = ts.shape
    D = basis_freq.shape[0]
    te = jnp.zeros((N1, N2, 2 * D), jnp.float32)
    te = te.at[:, :, 0::2].set(jnp.sin(map_ts))
    te = te.at[:, :, 1::2].set(jnp.cos(map_ts))
    return te


def _gat_ref(feature, adj, timestamp, a, time_end, p, alpha=0.05, eps=1e-6):
    z = jnp.dot(feature, p["W"], precision=_HI)
    N, D = z.shape
    a_input = jnp.concatenate(
        [jnp.tile(z, (1, N)).reshape(N * N, -1), jnp.tile(z, (N, 1))], axis=1
    ).reshape(N, N, 2 * D)
    time_emb = _time_encode_ref(time_end * jnp.ones_like(timestamp) - timestamp,
                                p["basis_freq"])
    e = jnp.matmul(a_input + time_emb, a, precision=_HI)[..., 0]
    e = jnp.where(e >= 0.0, e, alpha * e)
    att = jnp.where(adj > 0.0, e, -9e15)
    att = jax.nn.softmax(att, axis=1)
    temp = jnp.matmul(att, z, precision=_HI) + z
    mu = temp.mean(axis=1, keepdims=True)
    var = ((temp - mu) ** 2).mean(axis=1, keepdims=True)
    return (temp - mu) / jnp.sqrt(var + eps) * p["ln_gamma"] + p["ln_beta"]


def _gru_ref(x, hid, p):
    mm = lambda u, w: jnp.dot(u, w, precision=_HI)
    wxr, wxz, wxn = p["in2hid_w"]
    whr, whz, whn = p["hid2hid_w"]
    bxr, bxz, bxn = p["in2hid_b"]
    bhr, bhz, bhn = p["hid2hid_b"]
    r = jax.nn.sigmoid(mm(x, wxr) + bxr + mm(hid, whr) + bhr)
    z = jax.nn.sigmoid(mm(x, wxz) + bxz + mm(hid, whz) + bhz)
    n = jnp.tanh(mm(x, wxn) + bxn + r * (mm(hid, whn) + bhn))
    return (1.0 - z) * n + z * hid


def z_encoder_ref(adj, feature, timestamp, a_init, gat_params, gru_params, *, t_span):
    num_snapshot = adj.shape[0]
    N = feature.shape[0]
    a = a_init
    z_list = []
    emb = feature
    for i in range(num_snapshot):
        time_end = (i + 1) * t_span
        emb = _gat_ref(emb, adj[i], timestamp[i], a, time_end, gat_params)
        z_list.append(emb)
        a_hid = jnp.tile(a.T, (N, 1))
        a_next = _gru_ref(emb, a_hid, gru_params)
        a = jnp.mean(a_next, axis=0, keepdims=True).T
    return z_list, a


# ---------------------------------------------------------------------------
if __name__ == "__main__":
    key = jax.random.PRNGKey(0)
    ks = jax.random.split(key, 17)

    NUM_NODES = 8
    OUT_DIM = 16                   # GAT in/out dim; GRU hidden = 2*OUT_DIM
    HIDDEN = 2 * OUT_DIM
    NUM_SNAPSHOT = 3
    T_SPAN = 1.0

    # --- GraphAttentionLayer_edit parameters ------------------------------
    xav = 1.414 * math.sqrt(6.0 / (OUT_DIM + OUT_DIM))
    gat_params = {
        "W": jax.random.uniform(ks[0], (OUT_DIM, OUT_DIM), jnp.float32, -xav, xav),
        "basis_freq": jnp.asarray(
            (1.0 / 10.0 ** np.linspace(0, 9, OUT_DIM)).astype(np.float32)),
        "ln_gamma": jnp.ones((OUT_DIM,), jnp.float32),
        "ln_beta": jnp.zeros((OUT_DIM,), jnp.float32),
    }

    # --- GRUCell(OUT_DIM, HIDDEN) parameters -------------------------------
    lb, ub = -math.sqrt(1.0 / HIDDEN), math.sqrt(1.0 / HIDDEN)

    def uni(k, shape):
        return jax.random.uniform(k, shape, jnp.float32, minval=lb, maxval=ub)

    gru_params = {
        "in2hid_w": [uni(ks[1 + i], (OUT_DIM, HIDDEN)) for i in range(3)],
        "hid2hid_w": [uni(ks[4 + i], (HIDDEN, HIDDEN)) for i in range(3)],
        "in2hid_b": [uni(ks[7 + i], (HIDDEN,)) for i in range(3)],
        "hid2hid_b": [uni(ks[10 + i], (HIDDEN,)) for i in range(3)],
    }

    # --- inputs -------------------------------------------------------------
    feature = jax.random.normal(ks[13], (NUM_NODES, OUT_DIM), jnp.float32)
    timestamp = jax.random.uniform(ks[14], (NUM_SNAPSHOT, NUM_NODES, NUM_NODES),
                                   jnp.float32, 0.0, 1.0)
    adj = (jax.random.bernoulli(ks[15], 0.4, (NUM_SNAPSHOT, NUM_NODES, NUM_NODES))
           | jnp.eye(NUM_NODES, dtype=bool)[None]).astype(jnp.float32)
    a_init = jax.random.normal(ks[16], (HIDDEN, 1), jnp.float32)

    # --- run the fused Pallas forward ---------------------------------------
    fwd = jax.jit(functools.partial(z_encoder_forward, t_span=T_SPAN))
    z_all, a_final = fwd(adj, feature, timestamp, a_init, gat_params, gru_params)
    (z_all, a_final) = jax.block_until_ready((z_all, a_final))

    # --- reference check -----------------------------------------------------
    z_ref_list, a_ref = z_encoder_ref(adj, feature, timestamp, a_init,
                                      gat_params, gru_params, t_span=T_SPAN)

    tol = dict(atol=1e-3, rtol=1e-3)
    assert z_all.shape == (NUM_SNAPSHOT, NUM_NODES, OUT_DIM)
    for i in range(NUM_SNAPSHOT):
        assert jnp.allclose(z_all[i], z_ref_list[i], **tol), "z_emb mismatch vs reference"
    assert a_final.shape == (HIDDEN, 1)
    assert jnp.allclose(a_final, a_ref, **tol), "a mismatch vs reference"

    print("KERNEL_OK")
</pallas_src>

<mosaic_0001>
module attributes {stable_mosaic.version = 11 : i64} {
  func.func @_z_encoder_kernel(%arg0: i32, %arg1: memref<8x16xf32, #tpu.memory_space<vmem>>, %arg2: memref<1x32xf32, #tpu.memory_space<vmem>>, %arg3: memref<16x16xf32, #tpu.memory_space<vmem>>, %arg4: memref<2x16xf32, #tpu.memory_space<vmem>>, %arg5: memref<8x128xf32, #tpu.memory_space<vmem>>, %arg6: memref<128x32xf32, #tpu.memory_space<vmem>>, %arg7: memref<128x32xf32, #tpu.memory_space<vmem>>, %arg8: memref<128x8xf32, #tpu.memory_space<vmem>>, %arg9: memref<16x128xf32, #tpu.memory_space<vmem>>, %arg10: memref<32x128xf32, #tpu.memory_space<vmem>>, %arg11: memref<1x128xf32, #tpu.memory_space<vmem>>, %arg12: memref<1x8x8xf32, #tpu.memory_space<vmem>>, %arg13: memref<1x8x8xf32, #tpu.memory_space<vmem>>, %arg14: memref<1x8x16xf32, #tpu.memory_space<vmem>>, %arg15: memref<1x32xf32, #tpu.memory_space<vmem>>, %arg16: memref<8x16xf32, #tpu.memory_space<vmem>>, %arg17: memref<1x32xf32, #tpu.memory_space<vmem>>) attributes {dimension_semantics = [#tpu.dimension_semantics<arbitrary>], iteration_bounds = array<i64: 3>, scalar_prefetch = 0 : i64, scratch_operands = 2 : i64, tpu.core_type = #tpu.core_type<tc>, window_params = [{pipeline_mode = #tpu.pipeline_mode<synchronous>, transform_indices = @transform_0, window_bounds = array<i64: 8, 16>}, {pipeline_mode = #tpu.pipeline_mode<synchronous>, transform_indices = @transform_1, window_bounds = array<i64: 1, 32>}, {pipeline_mode = #tpu.pipeline_mode<synchronous>, transform_indices = @transform_2, window_bounds = array<i64: 16, 16>}, {pipeline_mode = #tpu.pipeline_mode<synchronous>, transform_indices = @transform_3, window_bounds = array<i64: 2, 16>}, {pipeline_mode = #tpu.pipeline_mode<synchronous>, transform_indices = @transform_4, window_bounds = array<i64: 8, 128>}, {pipeline_mode = #tpu.pipeline_mode<synchronous>, transform_indices = @transform_5, window_bounds = array<i64: 128, 32>}, {pipeline_mode = #tpu.pipeline_mode<synchronous>, transform_indices = @transform_6, window_bounds = array<i64: 128, 32>}, {pipeline_mode = #tpu.pipeline_mode<synchronous>, transform_indices = @transform_7, window_bounds = array<i64: 128, 8>}, {pipeline_mode = #tpu.pipeline_mode<synchronous>, transform_indices = @transform_8, window_bounds = array<i64: 16, 128>}, {pipeline_mode = #tpu.pipeline_mode<synchronous>, transform_indices = @transform_9, window_bounds = array<i64: 32, 128>}, {pipeline_mode = #tpu.pipeline_mode<synchronous>, transform_indices = @transform_10, window_bounds = array<i64: 1, 128>}, {transform_indices = @transform_11, window_bounds = array<i64: 1, 8, 8>}, {transform_indices = @transform_12, window_bounds = array<i64: 1, 8, 8>}, {transform_indices = @transform_13, window_bounds = array<i64: 1, 8, 16>}, {pipeline_mode = #tpu.pipeline_mode<synchronous>, transform_indices = @transform_14, window_bounds = array<i64: 1, 32>}]} {
    %c0_i32 = arith.constant 0 : i32
    %0 = arith.cmpi eq, %arg0, %c0_i32 : i32
    %1 = arith.extui %0 : i1 to i32
    %c0_i32_0 = arith.constant 0 : i32
    %2 = arith.cmpi ne, %1, %c0_i32_0 : i32
    scf.if %2 {
      %c0_64 = arith.constant 0 : index
      %c0_65 = arith.constant 0 : index
      %128 = vector.load %arg1[%c0_64, %c0_65] : memref<8x16xf32, #tpu.memory_space<vmem>>, vector<8x16xf32>
      %c0_66 = arith.constant 0 : index
      %c0_67 = arith.constant 0 : index
      %129 = vector.load %arg16[%c0_66, %c0_67] : memref<8x16xf32, #tpu.memory_space<vmem>>, vector<8x16xf32>
      tpu.vector_store %arg16[%c0_66, %c0_67], %128 {strides = array<i32>} : memref<8x16xf32, #tpu.memory_space<vmem>>, vector<8x16xf32>,
      %c0_68 = arith.constant 0 : index
      %c0_69 = arith.constant 0 : index
      %130 = vector.load %arg2[%c0_68, %c0_69] : memref<1x32xf32, #tpu.memory_space<vmem>>, vector<1x32xf32>
      %c0_70 = arith.constant 0 : index
      %c0_71 = arith.constant 0 : index
      %131 = vector.load %arg17[%c0_70, %c0_71] : memref<1x32xf32, #tpu.memory_space<vmem>>, vector<1x32xf32>
      tpu.vector_store %arg17[%c0_70, %c0_71], %130 {strides = array<i32>} : memref<1x32xf32, #tpu.memory_space<vmem>>, vector<1x32xf32>,
    } else {
    }
    %c0 = arith.constant 0 : index
    %c0_1 = arith.constant 0 : index
    %3 = vector.load %arg17[%c0, %c0_1] : memref<1x32xf32, #tpu.memory_space<vmem>>, vector<1x32xf32>
    %c0_2 = arith.constant 0 : index
    %c0_3 = arith.constant 0 : index
    %4 = vector.load %arg16[%c0_2, %c0_3] : memref<8x16xf32, #tpu.memory_space<vmem>>, vector<8x16xf32>
    %c0_4 = arith.constant 0 : index
    %c0_5 = arith.constant 0 : index
    %5 = vector.load %arg3[%c0_4, %c0_5] : memref<16x16xf32, #tpu.memory_space<vmem>>, vector<16x16xf32>
    %cst = arith.constant dense<0.000000e+00> : vector<8x16xf32>
    %6 = tpu.matmul %4, %5, %cst {dimension_numbers = #tpu.dot_dimension_numbers<[1], [0], [0], [1], [0, 0, 1, 1], [], []>} : vector<8x16xf32>, vector<16x16xf32>, vector<8x16xf32> -> vector<8x16xf32>
    %7 = vector.extract_strided_slice %3 {offsets = [0, 0], sizes = [1, 16], strides = [1, 1]} : vector<1x32xf32> to vector<1x16xf32>
    %8 = vector.broadcast %7 : vector<1x16xf32> to vector<8x16xf32>
    %9 = arith.mulf %6, %8 : vector<8x16xf32>
    %cst_6 = arith.constant dense<0.000000e+00> : vector<8xf32>
    %10 = vector.multi_reduction <add>, %9, %cst_6 [1] : vector<8x16xf32> to vector<8xf32>
    %11 = vector.shape_cast %10 : vector<8xf32> to vector<8x1xf32>
    %12 = vector.extract_strided_slice %3 {offsets = [0, 16], sizes = [1, 16], strides = [1, 1]} : vector<1x32xf32> to vector<1x16xf32>
    %cst_7 = arith.constant dense<0.000000e+00> : vector<1x8xf32>
    %13 = tpu.matmul %12, %6, %cst_7 {dimension_numbers = #tpu.dot_dimension_numbers<[1], [1], [0], [0], [0, 0, 1, 0], [], []>} : vector<1x16xf32>, vector<8x16xf32>, vector<1x8xf32> -> vector<1x8xf32>
    %c1_i32 = arith.constant 1 : i32
    %14 = arith.addi %arg0, %c1_i32 : i32
    %15 = arith.sitofp %14 : i32 to f32
    %cst_8 = arith.constant 1.000000e+00 : f32
    %16 = arith.mulf %15, %cst_8 : f32
    %c0_9 = arith.constant 0 : index
    %c0_10 = arith.constant 0 : index
    %c0_11 = arith.constant 0 : index
    %17 = vector.load %arg13[%c0_9, %c0_10, %c0_11] : memref<1x8x8xf32, #tpu.memory_space<vmem>>, vector<1x8x8xf32>
    %18 = vector.shape_cast %17 : vector<1x8x8xf32> to vector<8x8xf32>
    %19 = vector.broadcast %16 : f32 to vector<8x8xf32>
    %20 = arith.subf %19, %18 : vector<8x8xf32>
    %c0_12 = arith.constant 0 : index
    %c0_13 = arith.constant 0 : index
    %21 = vector.load %arg5[%c0_12, %c0_13] : memref<8x128xf32, #tpu.memory_space<vmem>>, vector<8x128xf32>
    %cst_14 = arith.constant dense<0.000000e+00> : vector<8x128xf32>
    %22 = tpu.matmul %20, %21, %cst_14 {dimension_numbers = #tpu.dot_dimension_numbers<[1], [0], [0], [1], [0, 0, 1, 1], [], []>} : vector<8x8xf32>, vector<8x128xf32>, vector<8x128xf32> -> vector<8x128xf32>
    %c0_15 = arith.constant 0 : index
    %c0_16 = arith.constant 0 : index
    %23 = vector.load %arg6[%c0_15, %c0_16] : memref<128x32xf32, #tpu.memory_space<vmem>>, vector<128x32xf32>
    %cst_17 = arith.constant dense<0.000000e+00> : vector<1x128xf32>
    %24 = tpu.matmul %3, %23, %cst_17 {dimension_numbers = #tpu.dot_dimension_numbers<[1], [1], [0], [0], [0, 0, 1, 0], [], []>} : vector<1x32xf32>, vector<128x32xf32>, vector<1x128xf32> -> vector<1x128xf32>
    %c0_18 = arith.constant 0 : index
    %c0_19 = arith.constant 0 : index
    %25 = vector.load %arg7[%c0_18, %c0_19] : memref<128x32xf32, #tpu.memory_space<vmem>>, vector<128x32xf32>
    %cst_20 = arith.constant dense<0.000000e+00> : vector<1x128xf32>
    %26 = tpu.matmul %3, %25, %cst_20 {dimension_numbers = #tpu.dot_dimension_numbers<[1], [1], [0], [0], [0, 0, 1, 0], [], []>} : vector<1x32xf32>, vector<128x32xf32>, vector<1x128xf32> -> vector<1x128xf32>
    %27 = math.sin %22 : vector<8x128xf32>
    %28 = vector.broadcast %24 : vector<1x128xf32> to vector<8x128xf32>
    %29 = arith.mulf %27, %28 : vector<8x128xf32>
    %30 = math.cos %22 : vector<8x128xf32>
    %31 = vector.broadcast %26 : vector<1x128xf32> to vector<8x128xf32>
    %32 = arith.mulf %30, %31 : vector<8x128xf32>
    %33 = arith.addf %29, %32 : vector<8x128xf32>
    %c0_21 = arith.constant 0 : index
    %c0_22 = arith.constant 0 : index
    %34 = vector.load %arg8[%c0_21, %c0_22] : memref<128x8xf32, #tpu.memory_space<vmem>>, vector<128x8xf32>
    %cst_23 = arith.constant dense<0.000000e+00> : vector<8x8xf32>
    %35 = tpu.matmul %33, %34, %cst_23 {dimension_numbers = #tpu.dot_dimension_numbers<[1], [0], [0], [1], [0, 0, 1, 1], [], []>} : vector<8x128xf32>, vector<128x8xf32>, vector<8x8xf32> -> vector<8x8xf32>
    %36 = vector.broadcast %11 : vector<8x1xf32> to vector<8x8xf32>
    %37 = vector.broadcast %13 : vector<1x8xf32> to vector<8x8xf32>
    %38 = arith.addf %36, %37 : vector<8x8xf32>
    %39 = arith.addf %38, %35 : vector<8x8xf32>
    %cst_24 = arith.constant 0.000000e+00 : f32
    %40 = vector.broadcast %cst_24 : f32 to vector<8x8xf32>
    %41 = arith.cmpf oge, %39, %40 : vector<8x8xf32>
    %cst_25 = arith.constant 5.000000e-02 : f32
    %42 = vector.broadcast %cst_25 : f32 to vector<8x8xf32>
    %43 = arith.mulf %42, %39 : vector<8x8xf32>
    %44 = arith.select %41, %39, %43 : vector<8x8xi1>, vector<8x8xf32>
    %c0_26 = arith.constant 0 : index
    %c0_27 = arith.constant 0 : index
    %c0_28 = arith.constant 0 : index
    %45 = vector.load %arg12[%c0_26, %c0_27, %c0_28] : memref<1x8x8xf32, #tpu.memory_space<vmem>>, vector<1x8x8xf32>
    %46 = vector.shape_cast %45 : vector<1x8x8xf32> to vector<8x8xf32>
    %cst_29 = arith.constant 0.000000e+00 : f32
    %47 = vector.broadcast %cst_29 : f32 to vector<8x8xf32>
    %48 = arith.cmpf ogt, %46, %47 : vector<8x8xf32>
    %cst_30 = arith.constant -9.000000e+15 : f32
    %49 = vector.broadcast %cst_30 : f32 to vector<8x8xf32>
    %50 = arith.select %48, %44, %49 : vector<8x8xi1>, vector<8x8xf32>
    %cst_31 = arith.constant dense<0xFF800000> : vector<8xf32>
    %51 = vector.multi_reduction <maximumf>, %50, %cst_31 [1] : vector<8x8xf32> to vector<8xf32>
    %52 = vector.shape_cast %51 : vector<8xf32> to vector<8x1xf32>
    %53 = vector.broadcast %52 : vector<8x1xf32> to vector<8x8xf32>
    %54 = arith.subf %50, %53 : vector<8x8xf32>
    %55 = math.exp %54 : vector<8x8xf32>
    %cst_32 = arith.constant dense<0.000000e+00> : vector<8xf32>
    %56 = vector.multi_reduction <add>, %55, %cst_32 [1] : vector<8x8xf32> to vector<8xf32>
    %57 = vector.shape_cast %56 : vector<8xf32> to vector<8x1xf32>
    %58 = vector.broadcast %57 : vector<8x1xf32> to vector<8x8xf32>
    %59 = arith.divf %55, %58 : vector<8x8xf32>
    %cst_33 = arith.constant dense<0.000000e+00> : vector<8x16xf32>
    %60 = tpu.matmul %59, %6, %cst_33 {dimension_numbers = #tpu.dot_dimension_numbers<[1], [0], [0], [1], [0, 0, 1, 1], [], []>} : vector<8x8xf32>, vector<8x16xf32>, vector<8x16xf32> -> vector<8x16xf32>
    %61 = arith.addf %60, %6 : vector<8x16xf32>
    %cst_34 = arith.constant dense<0.000000e+00> : vector<8xf32>
    %62 = vector.multi_reduction <add>, %61, %cst_34 [1] : vector<8x16xf32> to vector<8xf32>
    %63 = vector.shape_cast %62 : vector<8xf32> to vector<8x1xf32>
    %cst_35 = arith.constant 1.600000e+01 : f32
    %64 = vector.broadcast %cst_35 : f32 to vector<8x1xf32>
    %65 = arith.divf %63, %64 : vector<8x1xf32>
    %66 = vector.broadcast %65 : vector<8x1xf32> to vector<8x16xf32>
    %67 = arith.subf %61, %66 : vector<8x16xf32>
    %68 = arith.mulf %67, %67 : vector<8x16xf32>
    %cst_36 = arith.constant dense<0.000000e+00> : vector<8xf32>
    %69 = vector.multi_reduction <add>, %68, %cst_36 [1] : vector<8x16xf32> to vector<8xf32>
    %70 = vector.shape_cast %69 : vector<8xf32> to vector<8x1xf32>
    %cst_37 = arith.constant 1.600000e+01 : f32
    %71 = vector.broadcast %cst_37 : f32 to vector<8x1xf32>
    %72 = arith.divf %70, %71 : vector<8x1xf32>
    %73 = vector.broadcast %65 : vector<8x1xf32> to vector<8x16xf32>
    %74 = arith.subf %61, %73 : vector<8x16xf32>
    %cst_38 = arith.constant 9.99999997E-7 : f32
    %75 = vector.broadcast %cst_38 : f32 to vector<8x1xf32>
    %76 = arith.addf %72, %75 : vector<8x1xf32>
    %77 = math.rsqrt %76 : vector<8x1xf32>
    %78 = vector.broadcast %77 : vector<8x1xf32> to vector<8x16xf32>
    %79 = arith.mulf %74, %78 : vector<8x16xf32>
    %c0_39 = arith.constant 0 : index
    %c0_40 = arith.constant 0 : index
    %80 = vector.load %arg4[%c0_39, %c0_40] : memref<2x16xf32, #tpu.memory_space<vmem>>, vector<1x16xf32>
    %81 = vector.broadcast %80 : vector<1x16xf32> to vector<8x16xf32>
    %82 = arith.mulf %79, %81 : vector<8x16xf32>
    %c1 = arith.constant 1 : index
    %c0_41 = arith.constant 0 : index
    %83 = vector.load %arg4[%c1, %c0_41] : memref<2x16xf32, #tpu.memory_space<vmem>>, vector<1x16xf32>
    %84 = vector.broadcast %83 : vector<1x16xf32> to vector<8x16xf32>
    %85 = arith.addf %82, %84 : vector<8x16xf32>
    %c0_42 = arith.constant 0 : index
    %c0_43 = arith.constant 0 : index
    %c0_44 = arith.constant 0 : index
    %86 = vector.load %arg14[%c0_42, %c0_43, %c0_44] : memref<1x8x16xf32, #tpu.memory_space<vmem>>, vector<1x8x16xf32>
    %87 = vector.shape_cast %86 : vector<1x8x16xf32> to vector<8x16xf32>
    %88 = vector.shape_cast %85 : vector<8x16xf32> to vector<1x8x16xf32>
    tpu.vector_store %arg14[%c0_42, %c0_43, %c0_44], %88 {strides = array<i32>} : memref<1x8x16xf32, #tpu.memory_space<vmem>>, vector<1x8x16xf32>,
    %c0_45 = arith.constant 0 : index
    %c0_46 = arith.constant 0 : index
    %89 = vector.load %arg16[%c0_45, %c0_46] : memref<8x16xf32, #tpu.memory_space<vmem>>, vector<8x16xf32>
    tpu.vector_store %arg16[%c0_45, %c0_46], %85 {strides = array<i32>} : memref<8x16xf32, #tpu.memory_space<vmem>>, vector<8x16xf32>,
    %c0_47 = arith.constant 0 : index
    %c0_48 = arith.constant 0 : index
    %90 = vector.load %arg10[%c0_47, %c0_48] : memref<32x128xf32, #tpu.memory_space<vmem>>, vector<32x128xf32>
    %cst_49 = arith.constant dense<0.000000e+00> : vector<1x128xf32>
    %91 = tpu.matmul %3, %90, %cst_49 {dimension_numbers = #tpu.dot_dimension_numbers<[1], [0], [0], [1], [0, 0, 1, 1], [], []>} : vector<1x32xf32>, vector<32x128xf32>, vector<1x128xf32> -> vector<1x128xf32>
    %c0_50 = arith.constant 0 : index
    %c0_51 = arith.constant 0 : index
    %92 = vector.load %arg9[%c0_50, %c0_51] : memref<16x128xf32, #tpu.memory_space<vmem>>, vector<16x128xf32>
    %cst_52 = arith.constant dense<0.000000e+00> : vector<8x128xf32>
    %93 = tpu.matmul %85, %92, %cst_52 {dimension_numbers = #tpu.dot_dimension_numbers<[1], [0], [0], [1], [0, 0, 1, 1], [], []>} : vector<8x16xf32>, vector<16x128xf32>, vector<8x128xf32> -> vector<8x128xf32>
    %94 = vector.broadcast %91 : vector<1x128xf32> to vector<8x128xf32>
    %95 = arith.addf %93, %94 : vector<8x128xf32>
    %c0_53 = arith.constant 0 : index
    %c0_54 = arith.constant 0 : index
    %96 = vector.load %arg11[%c0_53, %c0_54] : memref<1x128xf32, #tpu.memory_space<vmem>>, vector<1x128xf32>
    %97 = vector.broadcast %96 : vector<1x128xf32> to vector<8x128xf32>
    %98 = arith.addf %95, %97 : vector<8x128xf32>
    %99 = vector.extract_strided_slice %98 {offsets = [0, 0], sizes = [8, 32], strides = [1, 1]} : vector<8x128xf32> to vector<8x32xf32>
    %100 = arith.negf %99 : vector<8x32xf32>
    %101 = math.exp %100 : vector<8x32xf32>
    %cst_55 = arith.constant 1.000000e+00 : f32
    %102 = vector.broadcast %cst_55 : f32 to vector<8x32xf32>
    %103 = arith.addf %102, %101 : vector<8x32xf32>
    %104 = arith.divf %102, %103 : vector<8x32xf32>
    %105 = vector.extract_strided_slice %98 {offsets = [0, 32], sizes = [8, 32], strides = [1, 1]} : vector<8x128xf32> to vector<8x32xf32>
    %106 = arith.negf %105 : vector<8x32xf32>
    %107 = math.exp %106 : vector<8x32xf32>
    %cst_56 = arith.constant 1.000000e+00 : f32
    %108 = vector.broadcast %cst_56 : f32 to vector<8x32xf32>
    %109 = arith.addf %108, %107 : vector<8x32xf32>
    %110 = arith.divf %108, %109 : vector<8x32xf32>
    %111 = vector.extract_strided_slice %98 {offsets = [0, 64], sizes = [8, 32], strides = [1, 1]} : vector<8x128xf32> to vector<8x32xf32>
    %112 = vector.extract_strided_slice %98 {offsets = [0, 96], sizes = [8, 32], strides = [1, 1]} : vector<8x128xf32> to vector<8x32xf32>
    %113 = arith.mulf %104, %112 : vector<8x32xf32>
    %114 = arith.addf %111, %113 : vector<8x32xf32>
    %115 = math.tanh %114 : vector<8x32xf32>
    %cst_57 = arith.constant 1.000000e+00 : f32
    %116 = vector.broadcast %cst_57 : f32 to vector<8x32xf32>
    %117 = arith.subf %116, %110 : vector<8x32xf32>
    %118 = arith.mulf %117, %115 : vector<8x32xf32>
    %119 = vector.broadcast %3 : vector<1x32xf32> to vector<8x32xf32>
    %120 = arith.mulf %110, %119 : vector<8x32xf32>
    %121 = arith.addf %118, %120 : vector<8x32xf32>
    %cst_58 = arith.constant dense<0.000000e+00> : vector<32xf32>
    %122 = vector.multi_reduction <add>, %121, %cst_58 [0] : vector<8x32xf32> to vector<32xf32>
    %123 = vector.shape_cast %122 : vector<32xf32> to vector<1x32xf32>
    %cst_59 = arith.constant 1.250000e-01 : f32
    %124 = vector.broadcast %cst_59 : f32 to vector<1x32xf32>
    %125 = arith.mulf %123, %124 : vector<1x32xf32>
    %c0_60 = arith.constant 0 : index
    %c0_61 = arith.constant 0 : index
    %126 = vector.load %arg17[%c0_60, %c0_61] : memref<1x32xf32, #tpu.memory_space<vmem>>, vector<1x32xf32>
    tpu.vector_store %arg17[%c0_60, %c0_61], %125 {strides = array<i32>} : memref<1x32xf32, #tpu.memory_space<vmem>>, vector<1x32xf32>,
    %c0_62 = arith.constant 0 : index
    %c0_63 = arith.constant 0 : index
    %127 = vector.load %arg15[%c0_62, %c0_63] : memref<1x32xf32, #tpu.memory_space<vmem>>, vector<1x32xf32>
    tpu.vector_store %arg15[%c0_62, %c0_63], %125 {strides = array<i32>} : memref<1x32xf32, #tpu.memory_space<vmem>>, vector<1x32xf32>,
    return
  }
  func.func @transform_0(%arg0: i32) -> (i32, i32) {
    %c0_i32 = arith.constant 0 : i32
    %c0_i32_0 = arith.constant 0 : i32
    %c0_i32_1 = arith.constant 0 : i32
    return %c0_i32, %c0_i32_0 : i32, i32
  }
  func.func @transform_1(%arg0: i32) -> (i32, i32) {
    %c0_i32 = arith.constant 0 : i32
    %c0_i32_0 = arith.constant 0 : i32
    %c0_i32_1 = arith.constant 0 : i32
    return %c0_i32, %c0_i32_0 : i32, i32
  }
  func.func @transform_2(%arg0: i32) -> (i32, i32) {
    %c0_i32 = arith.constant 0 : i32
    %c0_i32_0 = arith.constant 0 : i32
    %c0_i32_1 = arith.constant 0 : i32
    return %c0_i32, %c0_i32_0 : i32, i32
  }
  func.func @transform_3(%arg0: i32) -> (i32, i32) {
    %c0_i32 = arith.constant 0 : i32
    %c0_i32_0 = arith.constant 0 : i32
    %c0_i32_1 = arith.constant 0 : i32
    return %c0_i32, %c0_i32_0 : i32, i32
  }
  func.func @transform_4(%arg0: i32) -> (i32, i32) {
    %c0_i32 = arith.constant 0 : i32
    %c0_i32_0 = arith.constant 0 : i32
    %c0_i32_1 = arith.constant 0 : i32
    return %c0_i32, %c0_i32_0 : i32, i32
  }
  func.func @transform_5(%arg0: i32) -> (i32, i32) {
    %c0_i32 = arith.constant 0 : i32
    %c0_i32_0 = arith.constant 0 : i32
    %c0_i32_1 = arith.constant 0 : i32
    return %c0_i32, %c0_i32_0 : i32, i32
  }
  func.func @transform_6(%arg0: i32) -> (i32, i32) {
    %c0_i32 = arith.constant 0 : i32
    %c0_i32_0 = arith.constant 0 : i32
    %c0_i32_1 = arith.constant 0 : i32
    return %c0_i32, %c0_i32_0 : i32, i32
  }
  func.func @transform_7(%arg0: i32) -> (i32, i32) {
    %c0_i32 = arith.constant 0 : i32
    %c0_i32_0 = arith.constant 0 : i32
    %c0_i32_1 = arith.constant 0 : i32
    return %c0_i32, %c0_i32_0 : i32, i32
  }
  func.func @transform_8(%arg0: i32) -> (i32, i32) {
    %c0_i32 = arith.constant 0 : i32
    %c0_i32_0 = arith.constant 0 : i32
    %c0_i32_1 = arith.constant 0 : i32
    return %c0_i32, %c0_i32_0 : i32, i32
  }
  func.func @transform_9(%arg0: i32) -> (i32, i32) {
    %c0_i32 = arith.constant 0 : i32
    %c0_i32_0 = arith.constant 0 : i32
    %c0_i32_1 = arith.constant 0 : i32
    return %c0_i32, %c0_i32_0 : i32, i32
  }
  func.func @transform_10(%arg0: i32) -> (i32, i32) {
    %c0_i32 = arith.constant 0 : i32
    %c0_i32_0 = arith.constant 0 : i32
    %c0_i32_1 = arith.constant 0 : i32
    return %c0_i32, %c0_i32_0 : i32, i32
  }
  func.func @transform_11(%arg0: i32) -> (i32, i32, i32) {
    %c0_i32 = arith.constant 0 : i32
    %c0_i32_0 = arith.constant 0 : i32
    %c0_i32_1 = arith.constant 0 : i32
    return %arg0, %c0_i32, %c0_i32_0 : i32, i32, i32
  }
  func.func @transform_12(%arg0: i32) -> (i32, i32, i32) {
    %c0_i32 = arith.constant 0 : i32
    %c0_i32_0 = arith.constant 0 : i32
    %c0_i32_1 = arith.constant 0 : i32
    return %arg0, %c0_i32, %c0_i32_0 : i32, i32, i32
  }
  func.func @transform_13(%arg0: i32) -> (i32, i32, i32) {
    %c0_i32 = arith.constant 0 : i32
    %c0_i32_0 = arith.constant 0 : i32
    %c0_i32_1 = arith.constant 0 : i32
    return %arg0, %c0_i32, %c0_i32_0 : i32, i32, i32
  }
  func.func @transform_14(%arg0: i32) -> (i32, i32) {
    %c0_i32 = arith.constant 0 : i32
    %c0_i32_0 = arith.constant 0 : i32
    %c0_i32_1 = arith.constant 0 : i32
    return %c0_i32, %c0_i32_0 : i32, i32
  }
}

</mosaic_0001>

<llo_original>
// kernel: z_encoder_forward.1
$region0: #{z_encoder_forward.1}
  #allocation0 [shape = 'u32[]', space=smem, size = 0x4, offset = 0x4, fixed_abs, tag = 'smem constant byte address 0x4 - core index']
  #allocation1 [shape = 'u32[144,128]{1,0:T(1,128)}', space=vmem, size = 0x12000, scoped, tag = 'internal scratch']
  #allocation2 [shape = 'f32[8,16]{1,0:T(8,128)}', space=vmem, size = 0x1000, scoped, tag = 'scratch operand']
  #allocation3 [shape = 'f32[1,32]{1,0:T(1,128)}', space=vmem, size = 0x200, scoped, tag = 'scratch operand']
  %s0 = inlined_call_operand.hbm [shape: f32[8,16], index: 0, kind: input, shape index: {}]
  %s1 = inlined_call_operand.hbm [shape: f32[1,32], index: 1, kind: input, shape index: {}]
  %s2 = inlined_call_operand.hbm [shape: f32[16,16], index: 2, kind: input, shape index: {}]
  %s3 = inlined_call_operand.vmem [shape: f32[2,16], index: 3, kind: input, shape index: {}]
  %s4 = inlined_call_operand.vmem [shape: f32[8,128], index: 4, kind: input, shape index: {}]
  %s5 = inlined_call_operand.vmem [shape: f32[128,32], index: 5, kind: input, shape index: {}]
  %s6 = inlined_call_operand.vmem [shape: f32[128,32], index: 6, kind: input, shape index: {}]
  %s7 = inlined_call_operand.hbm [shape: f32[128,8], index: 7, kind: input, shape index: {}]
  %s8 = inlined_call_operand.vmem [shape: f32[16,128], index: 8, kind: input, shape index: {}]
  %s9 = inlined_call_operand.vmem [shape: f32[32,128], index: 9, kind: input, shape index: {}]
  %s10 = inlined_call_operand.vmem [shape: f32[1,128], index: 10, kind: input, shape index: {}]
  %s11 = inlined_call_operand.hbm [shape: f32[3,8,8], index: 11, kind: input, shape index: {}]
  %s12 = inlined_call_operand.hbm [shape: f32[3,8,8], index: 12, kind: input, shape index: {}]
  %s13 = inlined_call_operand.hbm [shape: f32[3,8,16], index: 13, kind: output, shape index: {0}]
  %s14 = inlined_call_operand.hbm [shape: f32[1,32], index: 14, kind: output, shape index: {1}]
  %15 = xla_tuple %s13, %s14
  %s16 = sld [smem:[#allocation0]]
  $region121: #{z_encoder_forward.1} parent=0
    _
  %s18 = ssub.s32 1, %s16
  %s19 = scalar_select 0, %s18, %s16
  $region1: #{z_encoder_forward.1} parent=0
    #allocation4 [shape = 'u8[4096]{0}', space=vmem, size = 0x1000, scoped, tag = 'input window, operand 0, single buffered']
    #allocation5 [shape = 's32[2]{0}', space=sflag, size = 0x8, scoped, tag = 'scoped memory for z_encoder_forward.1']
    #allocation6 [shape = 's32[2]{0}', space=sflag, size = 0x8, scoped, tag = 'scoped memory for z_encoder_forward.1']
    #allocation7 [shape = 'u8[512]{0}', space=vmem, size = 0x400, scoped, tag = 'input window, operand 1, single buffered']
    #allocation8 [shape = 's32[1]{0}', space=sflag, size = 0x4, scoped, tag = 'scoped memory for z_encoder_forward.1']
    #allocation9 [shape = 'u8[8192]{0}', space=vmem, size = 0x2000, scoped, tag = 'input window, operand 2, single buffered']
    #allocation10 [shape = 'u8[65536]{0}', space=vmem, size = 0x10000, scoped, tag = 'input window, operand 7, single buffered']
    #allocation11 [shape = 's32[1]{0}', space=sflag, size = 0x4, scoped, tag = 'scoped memory for z_encoder_forward.1']
    #allocation12 [shape = 'u8[8192]{0}', space=vmem, size = 0x2000, scoped, tag = 'input window, operand 11']
    #allocation13 [shape = 'u8[8192]{0}', space=vmem, size = 0x2000, scoped, tag = 'input window, operand 12']
    #allocation14 [shape = 'u8[8192]{0}', space=vmem, size = 0x2000, scoped, tag = 'output window, operand 0']
    #allocation15 [shape = 'u8[512]{0}', space=vmem, size = 0x400, scoped, tag = 'output window, operand 1, single buffered']
    #allocation16 [shape = 's32[1]{0}', space=sflag, size = 0x4, scoped, tag = 'scoped memory for z_encoder_forward.1']
    %20 = vsyncpa [#allocation5], 0
    %21 = vsyncpa [#allocation8], 0
    %22 = vsyncpa [#allocation11], 0
    %23 = vsyncpa [#allocation6], 0
    %s24 = scalar_lea.sflag [#allocation6], 1
    %25 = vsyncpa %s24, 0
    %26 = vsyncpa [#allocation16], 0
    loop: start=0, step=1, limit=5
    $region2: #{z_encoder_forward.1} parent=1 // loop_pre_header
      _
    $region3: #{z_encoder_forward.1} parent=1 // loop_header
      %s28 = sphi 0, %s32
      %p29 = scmp.ge.s32.totalorder %s28, 5
      %s36 = sphi 0, %s36
      %s38 = sphi 0, %s36
      %s39 = sphi 0, %s38
      %s53 = sphi 0, %s39
      %s57 = sphi 0, %s57
      %s59 = sphi 0, %s57
      %s60 = sphi 0, %s59
      %s74 = sphi 0, %s60
      %s78 = sphi 0, %s78
      %s80 = sphi 0, %s78
      %s81 = sphi 0, %s80
      %s95 = sphi 0, %s81
      %s99 = sphi 0, %s99
      %s101 = sphi 0, %s99
      %s102 = sphi 0, %s101
      %s116 = sphi 0, %s102
      %s120 = sphi 0, %s120
      %s122 = sphi 0, %s120
      %s123 = sphi 0, %s122
      %s137 = sphi 0, %s123
      %s141 = sphi 0, %s141
      %s143 = sphi 0, %s141
      %s144 = sphi 0, %s143
      %s158 = sphi 0, %s144
      %s162 = sphi 0, %s162
      %s164 = sphi 0, %s162
      %s165 = sphi 0, %s164
      %s179 = sphi 0, %s165
      %s183 = sphi 0, %s183
      %s185 = sphi 0, %s183
      %s186 = sphi 0, %s185
      %s200 = sphi 0, %s186
      %s204 = sphi 0, %s204
      %s206 = sphi 0, %s204
      %s207 = sphi 0, %s206
      %s221 = sphi 0, %s207
      %s225 = sphi 0, %s225
      %s227 = sphi 0, %s225
      %s228 = sphi 0, %s227
      %s242 = sphi 0, %s228
      %s246 = sphi 0, %s246
      %s248 = sphi 0, %s246
      %s249 = sphi 0, %s248
      %s263 = sphi 0, %s249
      %s269 = sphi 0, %s271
      %s272 = sphi 0, %s269
      %s273 = sphi 0, %s272
      %s289 = sphi 0, %s273
      %s295 = sphi 0, %s297
      %s298 = sphi 0, %s295
      %s299 = sphi 0, %s298
      %s315 = sphi 0, %s299
      %s321 = sphi 0, %s323
      %s324 = sphi 0, %s321
      %s325 = sphi 0, %s324
      %s341 = sphi 0, %s325
      %s345 = sphi 0, %s345
      %s347 = sphi 0, %s345
      %s348 = sphi 0, %s347
      %s362 = sphi 0, %s348
    $region4: #{z_encoder_forward.1} parent=1 // loop_header_branch
      %31 = sbr.rel (%p29) target = $region8
    $region5: #{z_encoder_forward.1} parent=1 // loop_body
      %s33 = ssub.s32 %s28, 1
      %s34 = ssub.s32 %s28, 2
      %s35 = sadd.s32 %s28, 1
      %s37 = sadd.s32 %s36, 1
      %p40 = scmp.eq.s32.totalorder %s28, 2
      %p41 = scmp.ne.s32.totalorder %s36, %s38
      %p42 = scmp.eq.s32.totalorder %s28, 0
      %p43 = por %p41, %p42
      %p44 = scmp.ne.s32.totalorder %s36, %s38
      %p45 = scmp.eq.s32.totalorder %s33, 2
      %p46 = por %p44, %p45
      %p47 = scmp.ne.s32.totalorder %s38, %s39
      %p48 = scmp.eq.s32.totalorder %s33, 0
      %p49 = por %p47, %p48
      %p50 = scmp.ne.s32.totalorder %s38, %s39
      %p51 = scmp.eq.s32.totalorder %s34, 2
      %p52 = por %p50, %p51
      %p54 = scmp.ne.s32.totalorder %s39, %s53
      %p55 = scmp.eq.s32.totalorder %s34, 0
      %p56 = por %p54, %p55
      %s58 = sadd.s32 %s57, 1
      %p61 = scmp.eq.s32.totalorder %s28, 2
      %p62 = scmp.ne.s32.totalorder %s57, %s59
      %p63 = scmp.eq.s32.totalorder %s28, 0
      %p64 = por %p62, %p63
      %p65 = scmp.ne.s32.totalorder %s57, %s59
      %p66 = scmp.eq.s32.totalorder %s33, 2
      %p67 = por %p65, %p66
      %p68 = scmp.ne.s32.totalorder %s59, %s60
      %p69 = scmp.eq.s32.totalorder %s33, 0
      %p70 = por %p68, %p69
      %p71 = scmp.ne.s32.totalorder %s59, %s60
      %p72 = scmp.eq.s32.totalorder %s34, 2
      %p73 = por %p71, %p72
      %p75 = scmp.ne.s32.totalorder %s60, %s74
      %p76 = scmp.eq.s32.totalorder %s34, 0
      %p77 = por %p75, %p76
      %s79 = sadd.s32 %s78, 1
      %p82 = scmp.eq.s32.totalorder %s28, 2
      %p83 = scmp.ne.s32.totalorder %s78, %s80
      %p84 = scmp.eq.s32.totalorder %s28, 0
      %p85 = por %p83, %p84
      %p86 = scmp.ne.s32.totalorder %s78, %s80
      %p87 = scmp.eq.s32.totalorder %s33, 2
      %p88 = por %p86, %p87
      %p89 = scmp.ne.s32.totalorder %s80, %s81
      %p90 = scmp.eq.s32.totalorder %s33, 0
      %p91 = por %p89, %p90
      %p92 = scmp.ne.s32.totalorder %s80, %s81
      %p93 = scmp.eq.s32.totalorder %s34, 2
      %p94 = por %p92, %p93
      %p96 = scmp.ne.s32.totalorder %s81, %s95
      %p97 = scmp.eq.s32.totalorder %s34, 0
      %p98 = por %p96, %p97
      %s100 = sadd.s32 %s99, 1
      %p103 = scmp.eq.s32.totalorder %s28, 2
      %p104 = scmp.ne.s32.totalorder %s99, %s101
      %p105 = scmp.eq.s32.totalorder %s28, 0
      %p106 = por %p104, %p105
      %p107 = scmp.ne.s32.totalorder %s99, %s101
      %p108 = scmp.eq.s32.totalorder %s33, 2
      %p109 = por %p107, %p108
      %p110 = scmp.ne.s32.totalorder %s101, %s102
      %p111 = scmp.eq.s32.totalorder %s33, 0
      %p112 = por %p110, %p111
      %p113 = scmp.ne.s32.totalorder %s101, %s102
      %p114 = scmp.eq.s32.totalorder %s34, 2
      %p115 = por %p113, %p114
      %p117 = scmp.ne.s32.totalorder %s102, %s116
      %p118 = scmp.eq.s32.totalorder %s34, 0
      %p119 = por %p117, %p118
      %s121 = sadd.s32 %s120, 1
      %p124 = scmp.eq.s32.totalorder %s28, 2
      %p125 = scmp.ne.s32.totalorder %s120, %s122
      %p126 = scmp.eq.s32.totalorder %s28, 0
      %p127 = por %p125, %p126
      %p128 = scmp.ne.s32.totalorder %s120, %s122
      %p129 = scmp.eq.s32.totalorder %s33, 2
      %p130 = por %p128, %p129
      %p131 = scmp.ne.s32.totalorder %s122, %s123
      %p132 = scmp.eq.s32.totalorder %s33, 0
      %p133 = por %p131, %p132
      %p134 = scmp.ne.s32.totalorder %s122, %s123
      %p135 = scmp.eq.s32.totalorder %s34, 2
      %p136 = por %p134, %p135
      %p138 = scmp.ne.s32.totalorder %s123, %s137
      %p139 = scmp.eq.s32.totalorder %s34, 0
      %p140 = por %p138, %p139
      %s142 = sadd.s32 %s141, 1
      %p145 = scmp.eq.s32.totalorder %s28, 2
      %p146 = scmp.ne.s32.totalorder %s141, %s143
      %p147 = scmp.eq.s32.totalorder %s28, 0
      %p148 = por %p146, %p147
      %p149 = scmp.ne.s32.totalorder %s141, %s143
      %p150 = scmp.eq.s32.totalorder %s33, 2
      %p151 = por %p149, %p150
      %p152 = scmp.ne.s32.totalorder %s143, %s144
      %p153 = scmp.eq.s32.totalorder %s33, 0
      %p154 = por %p152, %p153
      %p155 = scmp.ne.s32.totalorder %s143, %s144
      %p156 = scmp.eq.s32.totalorder %s34, 2
      %p157 = por %p155, %p156
      %p159 = scmp.ne.s32.totalorder %s144, %s158
      %p160 = scmp.eq.s32.totalorder %s34, 0
      %p161 = por %p159, %p160
      %s163 = sadd.s32 %s162, 1
      %p166 = scmp.eq.s32.totalorder %s28, 2
      %p167 = scmp.ne.s32.totalorder %s162, %s164
      %p168 = scmp.eq.s32.totalorder %s28, 0
      %p169 = por %p167, %p168
      %p170 = scmp.ne.s32.totalorder %s162, %s164
      %p171 = scmp.eq.s32.totalorder %s33, 2
      %p172 = por %p170, %p171
      %p173 = scmp.ne.s32.totalorder %s164, %s165
      %p174 = scmp.eq.s32.totalorder %s33, 0
      %p175 = por %p173, %p174
      %p176 = scmp.ne.s32.totalorder %s164, %s165
      %p177 = scmp.eq.s32.totalorder %s34, 2
      %p178 = por %p176, %p177
      %p180 = scmp.ne.s32.totalorder %s165, %s179
      %p181 = scmp.eq.s32.totalorder %s34, 0
      %p182 = por %p180, %p181
      %s184 = sadd.s32 %s183, 1
      %p187 = scmp.eq.s32.totalorder %s28, 2
      %p188 = scmp.ne.s32.totalorder %s183, %s185
      %p189 = scmp.eq.s32.totalorder %s28, 0
      %p190 = por %p188, %p189
      %p191 = scmp.ne.s32.totalorder %s183, %s185
      %p192 = scmp.eq.s32.totalorder %s33, 2
      %p193 = por %p191, %p192
      %p194 = scmp.ne.s32.totalorder %s185, %s186
      %p195 = scmp.eq.s32.totalorder %s33, 0
      %p196 = por %p194, %p195
      %p197 = scmp.ne.s32.totalorder %s185, %s186
      %p198 = scmp.eq.s32.totalorder %s34, 2
      %p199 = por %p197, %p198
      %p201 = scmp.ne.s32.totalorder %s186, %s200
      %p202 = scmp.eq.s32.totalorder %s34, 0
      %p203 = por %p201, %p202
      %s205 = sadd.s32 %s204, 1
      %p208 = scmp.eq.s32.totalorder %s28, 2
      %p209 = scmp.ne.s32.totalorder %s204, %s206
      %p210 = scmp.eq.s32.totalorder %s28, 0
      %p211 = por %p209, %p210
      %p212 = scmp.ne.s32.totalorder %s204, %s206
      %p213 = scmp.eq.s32.totalorder %s33, 2
      %p214 = por %p212, %p213
      %p215 = scmp.ne.s32.totalorder %s206, %s207
      %p216 = scmp.eq.s32.totalorder %s33, 0
      %p217 = por %p215, %p216
      %p218 = scmp.ne.s32.totalorder %s206, %s207
      %p219 = scmp.eq.s32.totalorder %s34, 2
      %p220 = por %p218, %p219
      %p222 = scmp.ne.s32.totalorder %s207, %s221
      %p223 = scmp.eq.s32.totalorder %s34, 0
      %p224 = por %p222, %p223
      %s226 = sadd.s32 %s225, 1
      %p229 = scmp.eq.s32.totalorder %s28, 2
      %p230 = scmp.ne.s32.totalorder %s225, %s227
      %p231 = scmp.eq.s32.totalorder %s28, 0
      %p232 = por %p230, %p231
      %p233 = scmp.ne.s32.totalorder %s225, %s227
      %p234 = scmp.eq.s32.totalorder %s33, 2
      %p235 = por %p233, %p234
      %p236 = scmp.ne.s32.totalorder %s227, %s228
      %p237 = scmp.eq.s32.totalorder %s33, 0
      %p238 = por %p236, %p237
      %p239 = scmp.ne.s32.totalorder %s227, %s228
      %p240 = scmp.eq.s32.totalorder %s34, 2
      %p241 = por %p239, %p240
      %p243 = scmp.ne.s32.totalorder %s228, %s242
      %p244 = scmp.eq.s32.totalorder %s34, 0
      %p245 = por %p243, %p244
      %s247 = sadd.s32 %s246, 1
      %p250 = scmp.eq.s32.totalorder %s28, 2
      %p251 = scmp.ne.s32.totalorder %s246, %s248
      %p252 = scmp.eq.s32.totalorder %s28, 0
      %p253 = por %p251, %p252
      %p254 = scmp.ne.s32.totalorder %s246, %s248
      %p255 = scmp.eq.s32.totalorder %s33, 2
      %p256 = por %p254, %p255
      %p257 = scmp.ne.s32.totalorder %s248, %s249
      %p258 = scmp.eq.s32.totalorder %s33, 0
      %p259 = por %p257, %p258
      %p260 = scmp.ne.s32.totalorder %s248, %s249
      %p261 = scmp.eq.s32.totalorder %s34, 2
      %p262 = por %p260, %p261
      %p264 = scmp.ne.s32.totalorder %s249, %s263
      %p265 = scmp.eq.s32.totalorder %s34, 0
      %p266 = por %p264, %p265
      %s267 = ssub.s32 %s28, %s35
      %p268 = scmp.eq.s32.totalorder %s267, 0
      %s270 = sadd.s32 %s269, 1
      %s271 = scalar_select %p268, %s269, %s270
      %p274 = pneg %p268
      %p275 = scmp.eq.s32.totalorder %s28, 2
      %p276 = por %p274, %p275
      %p277 = scmp.ne.s32.totalorder %s269, %s272
      %p278 = scmp.eq.s32.totalorder %s28, 0
      %p279 = por %p277, %p278
      %p280 = scmp.ne.s32.totalorder %s269, %s272
      %p281 = scmp.eq.s32.totalorder %s33, 2
      %p282 = por %p280, %p281
      %p283 = scmp.ne.s32.totalorder %s272, %s273
      %p284 = scmp.eq.s32.totalorder %s33, 0
      %p285 = por %p283, %p284
      %p286 = scmp.ne.s32.totalorder %s272, %s273
      %p287 = scmp.eq.s32.totalorder %s34, 2
      %p288 = por %p286, %p287
      %p290 = scmp.ne.s32.totalorder %s273, %s289
      %p291 = scmp.eq.s32.totalorder %s34, 0
      %p292 = por %p290, %p291
      %s293 = ssub.s32 %s28, %s35
      %p294 = scmp.eq.s32.totalorder %s293, 0
      %s296 = sadd.s32 %s295, 1
      %s297 = scalar_select %p294, %s295, %s296
      %p300 = pneg %p294
      %p301 = scmp.eq.s32.totalorder %s28, 2
      %p302 = por %p300, %p301
      %p303 = scmp.ne.s32.totalorder %s295, %s298
      %p304 = scmp.eq.s32.totalorder %s28, 0
      %p305 = por %p303, %p304
      %p306 = scmp.ne.s32.totalorder %s295, %s298
      %p307 = scmp.eq.s32.totalorder %s33, 2
      %p308 = por %p306, %p307
      %p309 = scmp.ne.s32.totalorder %s298, %s299
      %p310 = scmp.eq.s32.totalorder %s33, 0
      %p311 = por %p309, %p310
      %p312 = scmp.ne.s32.totalorder %s298, %s299
      %p313 = scmp.eq.s32.totalorder %s34, 2
      %p314 = por %p312, %p313
      %p316 = scmp.ne.s32.totalorder %s299, %s315
      %p317 = scmp.eq.s32.totalorder %s34, 0
      %p318 = por %p316, %p317
      %s319 = ssub.s32 %s28, %s35
      %p320 = scmp.eq.s32.totalorder %s319, 0
      %s322 = sadd.s32 %s321, 1
      %s323 = scalar_select %p320, %s321, %s322
      %p326 = pneg %p320
      %p327 = scmp.eq.s32.totalorder %s28, 2
      %p328 = por %p326, %p327
      %p329 = scmp.ne.s32.totalorder %s321, %s324
      %p330 = scmp.eq.s32.totalorder %s28, 0
      %p331 = por %p329, %p330
      %p332 = scmp.ne.s32.totalorder %s321, %s324
      %p333 = scmp.eq.s32.totalorder %s33, 2
      %p334 = por %p332, %p333
      %p335 = scmp.ne.s32.totalorder %s324, %s325
      %p336 = scmp.eq.s32.totalorder %s33, 0
      %p337 = por %p335, %p336
      %p338 = scmp.ne.s32.totalorder %s324, %s325
      %p339 = scmp.eq.s32.totalorder %s34, 2
      %p340 = por %p338, %p339
      %p342 = scmp.ne.s32.totalorder %s325, %s341
      %p343 = scmp.eq.s32.totalorder %s34, 0
      %p344 = por %p342, %p343
      %s346 = sadd.s32 %s345, 1
      %p349 = scmp.eq.s32.totalorder %s28, 2
      %p350 = scmp.ne.s32.totalorder %s345, %s347
      %p351 = scmp.eq.s32.totalorder %s28, 0
      %p352 = por %p350, %p351
      %p353 = scmp.ne.s32.totalorder %s345, %s347
      %p354 = scmp.eq.s32.totalorder %s33, 2
      %p355 = por %p353, %p354
      %p356 = scmp.ne.s32.totalorder %s347, %s348
      %p357 = scmp.eq.s32.totalorder %s33, 0
      %p358 = por %p356, %p357
      %p359 = scmp.ne.s32.totalorder %s347, %s348
      %p360 = scmp.eq.s32.totalorder %s34, 2
      %p361 = por %p359, %p360
      %p363 = scmp.ne.s32.totalorder %s348, %s362
      %p364 = scmp.eq.s32.totalorder %s34, 0
      %p365 = por %p363, %p364
      %p366 = scmp.le.s32.totalorder 1, %s28
      %p367 = scmp.lt.s32.totalorder %s28, 4
      %p368 = pnand %p366, %p367
      %p369 = pneg %p368
      // Predicated region
      $region9: #{z_encoder_forward.1} parent=5 // pred_check
        _
      $region10: #{z_encoder_forward.1} parent=5 // pred_check_branch
        %371 = sbr.rel (%p368) target = $region12
      $region11: #{z_encoder_forward.1} parent=5 // pred_region
        %s372 = ssub.s32 %s28, 1
        // Predicated region
        $region13: #{z_encoder_forward.1} parent=11 // pred_check
          %p373 = pneg %p49
        $region14: #{z_encoder_forward.1} parent=11 // pred_check_branch
          %375 = sbr.rel (%p373) target = $region16
        $region15: #{z_encoder_forward.1} parent=11 // pred_region
          %s377 = ssub.s32 128, 128
          %378 = vsyncadd [#allocation5], %s377
          %s380 = sshll.u32 [#allocation4], 4
          %s381 = int_to_ptr.vmem [resolvable:$true] %s380
          %383 = dma.hbm_to_vmem [thread:$0]  %s0, 128, %s381, [#allocation5]
        $region16: #{z_encoder_forward.1} parent=11 // pred_fallthru
          _
        // Predicated region
        $region17: #{z_encoder_forward.1} parent=11 // pred_check
          %p384 = pneg %p70
        $region18: #{z_encoder_forward.1} parent=11 // pred_check_branch
          %386 = sbr.rel (%p384) target = $region20
        $region19: #{z_encoder_forward.1} parent=11 // pred_region
          %s388 = ssub.s32 16, 16
          %389 = vsyncadd [#allocation8], %s388
          %s391 = sshll.u32 [#allocation7], 4
          %s392 = int_to_ptr.vmem [resolvable:$true] %s391
          %394 = dma.hbm_to_vmem [thread:$0]  %s1, 16, %s392, [#allocation8]
        $region20: #{z_encoder_forward.1} parent=11 // pred_fallthru
          _
        // Predicated region
        $region21: #{z_encoder_forward.1} parent=11 // pred_check
          %p395 = pneg %p91
        $region22: #{z_encoder_forward.1} parent=11 // pred_check_branch
          %397 = sbr.rel (%p395) target = $region24
        $region23: #{z_encoder_forward.1} parent=11 // pred_region
          %s399 = ssub.s32 256, 256
          %400 = vsyncadd [#allocation8], %s399
          %s401 = sshll.u32 [#allocation9], 4
          %s402 = int_to_ptr.vmem [resolvable:$true] %s401
          %407 = dma.hbm_to_vmem [thread:$0]  %s2, 256, %s402, [#allocation8], 128, 128, 8
        $region24: #{z_encoder_forward.1} parent=11 // pred_fallthru
          _
        // Predicated region
        $region25: #{z_encoder_forward.1} parent=11 // pred_check
          %p408 = pneg %p112
        $region26: #{z_encoder_forward.1} parent=11 // pred_check_branch
          %410 = sbr.rel (%p408) target = $region28
        $region27: #{z_encoder_forward.1} parent=11 // pred_region
          _
        $region28: #{z_encoder_forward.1} parent=11 // pred_fallthru
          _
        // Predicated region
        $region29: #{z_encoder_forward.1} parent=11 // pred_check
          %p411 = pneg %p133
        $region30: #{z_encoder_forward.1} parent=11 // pred_check_branch
          %413 = sbr.rel (%p411) target = $region32
        $region31: #{z_encoder_forward.1} parent=11 // pred_region
          _
        $region32: #{z_encoder_forward.1} parent=11 // pred_fallthru
          _
        // Predicated region
        $region33: #{z_encoder_forward.1} parent=11 // pred_check
          %p414 = pneg %p154
        $region34: #{z_encoder_forward.1} parent=11 // pred_check_branch
          %416 = sbr.rel (%p414) target = $region36
        $region35: #{z_encoder_forward.1} parent=11 // pred_region
          _
        $region36: #{z_encoder_forward.1} parent=11 // pred_fallthru
          _
        // Predicated region
        $region37: #{z_encoder_forward.1} parent=11 // pred_check
          %p417 = pneg %p175
        $region38: #{z_encoder_forward.1} parent=11 // pred_check_branch
          %419 = sbr.rel (%p417) target = $region40
        $region39: #{z_encoder_forward.1} parent=11 // pred_region
          _
        $region40: #{z_encoder_forward.1} parent=11 // pred_fallthru
          _
        // Predicated region
        $region41: #{z_encoder_forward.1} parent=11 // pred_check
          %p420 = pneg %p196
        $region42: #{z_encoder_forward.1} parent=11 // pred_check_branch
          %422 = sbr.rel (%p420) target = $region44
        $region43: #{z_encoder_forward.1} parent=11 // pred_region
          %s424 = ssub.s32 2048, 2048
          %425 = vsyncadd [#allocation11], %s424
          %s426 = sshll.u32 [#allocation10], 4
          %s427 = int_to_ptr.vmem [resolvable:$true] %s426
          %432 = dma.hbm_to_vmem [thread:$0]  %s7, 2048, %s427, [#allocation11], 128, 128, 8
        $region44: #{z_encoder_forward.1} parent=11 // pred_fallthru
          _
        // Predicated region
        $region45: #{z_encoder_forward.1} parent=11 // pred_check
          %p433 = pneg %p217
        $region46: #{z_encoder_forward.1} parent=11 // pred_check_branch
          %435 = sbr.rel (%p433) target = $region48
        $region47: #{z_encoder_forward.1} parent=11 // pred_region
          _
        $region48: #{z_encoder_forward.1} parent=11 // pred_fallthru
          _
        // Predicated region
        $region49: #{z_encoder_forward.1} parent=11 // pred_check
          %p436 = pneg %p238
        $region50: #{z_encoder_forward.1} parent=11 // pred_check_branch
          %438 = sbr.rel (%p436) target = $region52
        $region51: #{z_encoder_forward.1} parent=11 // pred_region
          _
        $region52: #{z_encoder_forward.1} parent=11 // pred_fallthru
          _
        // Predicated region
        $region53: #{z_encoder_forward.1} parent=11 // pred_check
          %p439 = pneg %p259
        $region54: #{z_encoder_forward.1} parent=11 // pred_check_branch
          %441 = sbr.rel (%p439) target = $region56
        $region55: #{z_encoder_forward.1} parent=11 // pred_region
          _
        $region56: #{z_encoder_forward.1} parent=11 // pred_fallthru
          _
      $region12: #{z_encoder_forward.1} parent=5 // pred_fallthru
        _
      %p442 = scmp.lt.s32.totalorder %s28, 3
      // Predicated region
      $region57: #{z_encoder_forward.1} parent=5 // pred_check
        %p443 = pneg %p442
      $region58: #{z_encoder_forward.1} parent=5 // pred_check_branch
        %445 = sbr.rel (%p443) target = $region60
      $region59: #{z_encoder_forward.1} parent=5 // pred_region
        // Predicated region
        $region61: #{z_encoder_forward.1} parent=59 // pred_check
          %p446 = pneg %p279
        $region62: #{z_encoder_forward.1} parent=59 // pred_check_branch
          %448 = sbr.rel (%p446) target = $region64
        $region63: #{z_encoder_forward.1} parent=59 // pred_region
          %s449 = sand.u32 %s28, 1
          %s450 = scalar_lea.sflag [#allocation5], %s449
          %s451 = sand.u32 %s269, 1
          %s452 = smul.addr %s451, 8
          %s453 = scalar_lea.vmem [#allocation12], %s452
          %s455 = ssub.s32 128, 128
          %456 = vsyncadd %s450, %s455
          %s457 = smul.addr %s28, 128
          %s458 = scalar_lea.hbm %s11, %s457
          %s460 = sshll.u32 %s453, 4
          %s461 = int_to_ptr.vmem [resolvable:$true] %s460
          %463 = dma.hbm_to_vmem [thread:$0]  %s458, 128, %s461, %s450
        $region64: #{z_encoder_forward.1} parent=59 // pred_fallthru
          _
        // Predicated region
        $region65: #{z_encoder_forward.1} parent=59 // pred_check
          %p464 = pneg %p305
        $region66: #{z_encoder_forward.1} parent=59 // pred_check_branch
          %466 = sbr.rel (%p464) target = $region68
        $region67: #{z_encoder_forward.1} parent=59 // pred_region
          %s467 = sand.u32 %s28, 1
          %s468 = scalar_lea.sflag [#allocation5], %s467
          %s469 = sand.u32 %s295, 1
          %s470 = smul.addr %s469, 8
          %s471 = scalar_lea.vmem [#allocation13], %s470
          %s473 = ssub.s32 128, 128
          %474 = vsyncadd %s468, %s473
          %s475 = smul.addr %s28, 128
          %s476 = scalar_lea.hbm %s12, %s475
          %s478 = sshll.u32 %s471, 4
          %s479 = int_to_ptr.vmem [resolvable:$true] %s478
          %481 = dma.hbm_to_vmem [thread:$0]  %s476, 128, %s479, %s468
        $region68: #{z_encoder_forward.1} parent=59 // pred_fallthru
          _
      $region60: #{z_encoder_forward.1} parent=5 // pred_fallthru
        _
      %p482 = scmp.le.s32.totalorder 1, %s28
      %p483 = scmp.lt.s32.totalorder %s28, 4
      %p484 = pnand %p482, %p483
      %p485 = pneg %p484
      // Predicated region
      $region69: #{z_encoder_forward.1} parent=5 // pred_check
        _
      $region70: #{z_encoder_forward.1} parent=5 // pred_check_branch
        %487 = sbr.rel (%p484) target = $region72
      $region71: #{z_encoder_forward.1} parent=5 // pred_region
        %s488 = ssub.s32 %s28, 1
        // Predicated region
        $region73: #{z_encoder_forward.1} parent=71 // pred_check
          %p489 = pneg %p49
        $region74: #{z_encoder_forward.1} parent=71 // pred_check_branch
          %491 = sbr.rel (%p489) target = $region76
        $region75: #{z_encoder_forward.1} parent=71 // pred_region
          %492 = dma.done [#allocation5], 128
        $region76: #{z_encoder_forward.1} parent=71 // pred_fallthru
          _
        // Predicated region
        $region77: #{z_encoder_forward.1} parent=71 // pred_check
          %p493 = pneg %p70
        $region78: #{z_encoder_forward.1} parent=71 // pred_check_branch
          %495 = sbr.rel (%p493) target = $region80
        $region79: #{z_encoder_forward.1} parent=71 // pred_region
          %496 = dma.done [#allocation8], 16
        $region80: #{z_encoder_forward.1} parent=71 // pred_fallthru
          _
        // Predicated region
        $region81: #{z_encoder_forward.1} parent=71 // pred_check
          %p497 = pneg %p91
        $region82: #{z_encoder_forward.1} parent=71 // pred_check_branch
          %499 = sbr.rel (%p497) target = $region84
        $region83: #{z_encoder_forward.1} parent=71 // pred_region
          %500 = dma.done [#allocation8], 256
        $region84: #{z_encoder_forward.1} parent=71 // pred_fallthru
          _
        // Predicated region
        $region85: #{z_encoder_forward.1} parent=71 // pred_check
          %p501 = pneg %p196
        $region86: #{z_encoder_forward.1} parent=71 // pred_check_branch
          %503 = sbr.rel (%p501) target = $region88
        $region87: #{z_encoder_forward.1} parent=71 // pred_region
          %504 = dma.done [#allocation11], 2048
        $region88: #{z_encoder_forward.1} parent=71 // pred_fallthru
          _
        %s505 = sand.u32 %s33, 1
        %s506 = scalar_lea.sflag [#allocation5], %s505
        %s507 = sand.u32 %s272, 1
        %s508 = smul.addr %s507, 8
        %s509 = scalar_lea.vmem [#allocation12], %s508
        // Predicated region
        $region89: #{z_encoder_forward.1} parent=71 // pred_check
          %p510 = pneg %p285
        $region90: #{z_encoder_forward.1} parent=71 // pred_check_branch
          %512 = sbr.rel (%p510) target = $region92
        $region91: #{z_encoder_forward.1} parent=71 // pred_region
          %513 = dma.done %s506, 128
        $region92: #{z_encoder_forward.1} parent=71 // pred_fallthru
          _
        %s514 = sand.u32 %s33, 1
        %s515 = scalar_lea.sflag [#allocation5], %s514
        %s516 = sand.u32 %s298, 1
        %s517 = smul.addr %s516, 8
        %s518 = scalar_lea.vmem [#allocation13], %s517
        // Predicated region
        $region93: #{z_encoder_forward.1} parent=71 // pred_check
          %p519 = pneg %p311
        $region94: #{z_encoder_forward.1} parent=71 // pred_check_branch
          %521 = sbr.rel (%p519) target = $region96
        $region95: #{z_encoder_forward.1} parent=71 // pred_region
          %522 = dma.done %s515, 128
        $region96: #{z_encoder_forward.1} parent=71 // pred_fallthru
          _
        %p523 = pneg %p49
        %p524 = pneg %p46
        %p525 = pneg %p70
        %p526 = pneg %p67
        %p527 = pneg %p91
        %p528 = pneg %p88
        %p529 = pneg %p112
        %p530 = pneg %p109
        %p531 = pneg %p133
        %p532 = pneg %p130
        %p533 = pneg %p154
        %p534 = pneg %p151
        %p535 = pneg %p175
        %p536 = pneg %p172
        %p537 = pneg %p196
        %p538 = pneg %p193
        %p539 = pneg %p217
        %p540 = pneg %p214
        %p541 = pneg %p238
        %p542 = pneg %p235
        %p543 = pneg %p259
        %p544 = pneg %p256
        %s545 = sand.u32 %s33, 1
        %s546 = scalar_lea.sflag [#allocation5], %s545
        %s547 = sand.u32 %s272, 1
        %s548 = smul.addr %s547, 8
        %s549 = scalar_lea.vmem [#allocation12], %s548
        %p550 = pneg %p285
        %p551 = pneg %p282
        %s552 = sand.u32 %s33, 1
        %s553 = scalar_lea.sflag [#allocation5], %s552
        %s554 = sand.u32 %s298, 1
        %s555 = smul.addr %s554, 8
        %s556 = scalar_lea.vmem [#allocation13], %s555
        %p557 = pneg %p311
        %p558 = pneg %p308
        %p559 = pneg %p337
        %p560 = pneg %p334
        %s561 = sand.u32 %s324, 1
        %s562 = scalar_lea.sflag [#allocation6], %s561
        %s563 = sand.u32 %s324, 1
        %s564 = smul.addr %s563, 8
        %s565 = scalar_lea.vmem [#allocation14], %s564
        %p566 = pneg %p358
        %p567 = pneg %p355
        %p568 = scmp.eq.s32.totalorder %s33, 0
        // Predicated region
        $region97: #{z_encoder_forward.1} parent=71 // pred_check
          %p569 = pneg %p568
        $region98: #{z_encoder_forward.1} parent=71 // pred_check_branch
          %571 = sbr.rel (%p569) target = $region100
        $region99: #{z_encoder_forward.1} parent=71 // pred_region
          %v572 = vld [vmem:[#allocation4] sm:$0xff]
          %vm573 = vcmask 130048
          %574 = vst.msk [vmem:[#allocation2] sm:$0xff] %vm573, %v572
          %v575 = vld [vmem:[#allocation7] sm:$0x1]
          %vm576 = vcmask 253952
          %577 = vst.msk [vmem:[#allocation3] sm:$0x1] %vm576, %v575
        $region100: #{z_encoder_forward.1} parent=71 // pred_fallthru
          _
        %v578 = vld [vmem:[#allocation3] sm:$0x1]
        %v579 = vld [vmem:[#allocation2] sm:$0xff]
        %v580 = vld [vmem:[#allocation9] sm:$0xff]
        %v581 = vld [vmem:[#allocation9 + $0x8] sm:$0xff]
        %vm582 = vcmask 130048
        %v584 = vsel %vm582, %v579, 0
        %586 = vmatprep.subr.mxu0 0.0
        %587 = vmatpush1.msra.mxu0 %v580
        %588 = vmatprep.subr.mxu0 0.0
        %589 = vmatpush1.msra.mxu0 %v581
        %590 = vmatprep.subr.mxu0 0.0
        %591 = vmatpush1.msra.mxu0 0.0
        %592 = vmatprep.subr.mxu0 0.0
        %593 = vmatpush1.msra.mxu0 0.0
        %594 = vmatprep.subr.mxu0 0.0
        %595 = vmatpush1.msra.mxu0 0.0
        %596 = vmatprep.subr.mxu0 0.0
        %597 = vmatpush1.msra.mxu0 0.0
        %598 = vmatprep.subr.mxu0 0.0
        %599 = vmatpush1.msra.mxu0 0.0
        %600 = vmatprep.subr.mxu0 0.0
        %601 = vmatpush1.msra.mxu0 0.0
        %602 = vmatprep.subr.mxu0 0.0
        %603 = vmatpush1.msra.mxu0 0.0
        %604 = vmatprep.subr.mxu0 0.0
        %605 = vmatpush1.msra.mxu0 0.0
        %606 = vmatprep.subr.mxu0 0.0
        %607 = vmatpush1.msra.mxu0 0.0
        %608 = vmatprep.subr.mxu0 0.0
        %609 = vmatpush1.msra.mxu0 0.0
        %610 = vmatprep.subr.mxu0 0.0
        %611 = vmatpush1.msra.mxu0 0.0
        %612 = vmatprep.subr.mxu0 0.0
        %613 = vmatpush1.msra.mxu0 0.0
        %614 = vmatprep.subr.mxu0 0.0
        %615 = vmatpush1.msra.mxu0 0.0
        %616 = vmatprep.subr.mxu0 0.0
        %617 = vmatpush1.msra.mxu0 0.0
        %618 = vmatprep.subr.mxu0 0.0
        %619 = vmatpush1.msra.mxu0 0.0
        %620 = vmatprep.subr.mxu0 0.0
        %621 = vmatpush1.msra.mxu0 0.0
        %622 = vmatprep.subr.mxu0 0.0
        %623 = vmatpush1.msra.mxu0 0.0
        %624 = vmatprep.subr.mxu0 0.0
        %625 = vmatpush1.msra.mxu0 0.0
        %626 = vmatprep.subr.mxu0 0.0
        %627 = vmatpush1.msra.mxu0 0.0
        %628 = vmatprep.subr.mxu0 0.0
        %629 = vmatpush1.msra.mxu0 0.0
        %630 = vmatprep.subr.mxu0 0.0
        %631 = vmatpush1.msra.mxu0 0.0
        %632 = vmatprep.subr.mxu0 0.0
        %633 = vmatpush1.msra.mxu0 0.0
        %634 = vmatprep.subr.mxu0 0.0
        %635 = vmatpush1.msra.mxu0 0.0
        %636 = vmatprep.subr.mxu0 0.0
        %637 = vmatpush1.msra.mxu0 0.0
        %638 = vmatprep.subr.mxu0 0.0
        %639 = vmatpush1.msra.mxu0 0.0
        %640 = vmatprep.subr.mxu0 0.0
        %641 = vmatpush1.msra.mxu0 0.0
        %642 = vmatprep.subr.mxu0 0.0
        %643 = vmatpush1.msra.mxu0 0.0
        %644 = vmatprep.subr.mxu0 0.0
        %645 = vmatpush1.msra.mxu0 0.0
        %646 = vmatprep.subr.mxu0 0.0
        %647 = vmatpush1.msra.mxu0 0.0
        %648 = vmatprep.subr.mxu0 0.0
        %649 = vmatpush1.msra.mxu0 0.0
        %650 = vmatprep.mubr.f32.mxu0 0.0
        %651 = vmatmul.mubr.f32.gmra.mrb[0].mxu0 %v584
        %v652 = vpop.f32.mrb[0].mxu0
        %v653 = vadd.f32 0.0, %v652
        %v654 = vpop.f32.mrb[0].mxu0
        %655 = vdwg.mxu0
        %v657 = vlaneseq
        %v658 = vshrl.u32 %v657, 7
        %v659 = vsub.s32 0, %v658
        %v660 = vrot.slane %v578, %v659
        %v662 = vmul.f32 %v653, %v660
        %v663 = vsel %vm582, %v662, 0.0
        %664 = vadd.xlane.f32.xlu0 %v663
        %v665 = vpop.xlane.xlu0 %664
        %666 = vrot.lane.b32.xlu0 %v660, 112
        %v667 = vpop.permute.xlu0 %666
        %v668 = vsel %vm582, %v667, 0
        %v671 = vsel %vm582, %v653, 0
        %673 = vmatprep.subr.mxu0 0.0
        %674 = vmatpush1.xpose.msra.mxu0 %v671
        %675 = vmatprep.subr.mxu0 0.0
        %676 = vmatpush1.xpose.msra.mxu0 0.0
        %677 = vmatprep.subr.mxu0 0.0
        %678 = vmatpush1.xpose.msra.mxu0 0.0
        %679 = vmatprep.subr.mxu0 0.0
        %680 = vmatpush1.xpose.msra.mxu0 0.0
        %681 = vmatprep.subr.mxu0 0.0
        %682 = vmatpush1.xpose.msra.mxu0 0.0
        %683 = vmatprep.subr.mxu0 0.0
        %684 = vmatpush1.xpose.msra.mxu0 0.0
        %685 = vmatprep.subr.mxu0 0.0
        %686 = vmatpush1.xpose.msra.mxu0 0.0
        %687 = vmatprep.subr.mxu0 0.0
        %688 = vmatpush1.xpose.msra.mxu0 0.0
        %689 = vmatprep.subr.mxu0 0.0
        %690 = vmatpush1.xpose.msra.mxu0 0.0
        %691 = vmatprep.subr.mxu0 0.0
        %692 = vmatpush1.xpose.msra.mxu0 0.0
        %693 = vmatprep.subr.mxu0 0.0
        %694 = vmatpush1.xpose.msra.mxu0 0.0
        %695 = vmatprep.subr.mxu0 0.0
        %696 = vmatpush1.xpose.msra.mxu0 0.0
        %697 = vmatprep.subr.mxu0 0.0
        %698 = vmatpush1.xpose.msra.mxu0 0.0
        %699 = vmatprep.subr.mxu0 0.0
        %700 = vmatpush1.xpose.msra.mxu0 0.0
        %701 = vmatprep.subr.mxu0 0.0
        %702 = vmatpush1.xpose.msra.mxu0 0.0
        %703 = vmatprep.subr.mxu0 0.0
        %704 = vmatpush1.xpose.msra.mxu0 0.0
        %705 = vmatprep.subr.mxu0 0.0
        %706 = vmatpush1.xpose.msra.mxu0 0.0
        %707 = vmatprep.subr.mxu0 0.0
        %708 = vmatpush1.xpose.msra.mxu0 0.0
        %709 = vmatprep.subr.mxu0 0.0
        %710 = vmatpush1.xpose.msra.mxu0 0.0
        %711 = vmatprep.subr.mxu0 0.0
        %712 = vmatpush1.xpose.msra.mxu0 0.0
        %713 = vmatprep.subr.mxu0 0.0
        %714 = vmatpush1.xpose.msra.mxu0 0.0
        %715 = vmatprep.subr.mxu0 0.0
        %716 = vmatpush1.xpose.msra.mxu0 0.0
        %717 = vmatprep.subr.mxu0 0.0
        %718 = vmatpush1.xpose.msra.mxu0 0.0
        %719 = vmatprep.subr.mxu0 0.0
        %720 = vmatpush1.xpose.msra.mxu0 0.0
        %721 = vmatprep.subr.mxu0 0.0
        %722 = vmatpush1.xpose.msra.mxu0 0.0
        %723 = vmatprep.subr.mxu0 0.0
        %724 = vmatpush1.xpose.msra.mxu0 0.0
        %725 = vmatprep.subr.mxu0 0.0
        %726 = vmatpush1.xpose.msra.mxu0 0.0
        %727 = vmatprep.subr.mxu0 0.0
        %728 = vmatpush1.xpose.msra.mxu0 0.0
        %729 = vmatprep.subr.mxu0 0.0
        %730 = vmatpush1.xpose.msra.mxu0 0.0
        %731 = vmatprep.subr.mxu0 0.0
        %732 = vmatpush1.xpose.msra.mxu0 0.0
        %733 = vmatprep.subr.mxu0 0.0
        %734 = vmatpush1.xpose.msra.mxu0 0.0
        %735 = vmatprep.subr.mxu0 0.0
        %736 = vmatpush1.xpose.msra.mxu0 0.0
        %737 = vmatprep.mubr.f32.mxu0 0.0
        %738 = vmatmul.mubr.f32.gmra.mrb[0].mxu0 %v668
        %v739 = vpop.f32.mrb[0].mxu0
        %v740 = vadd.f32 0.0, %v739
        %v741 = vpop.f32.mrb[0].mxu0
        %742 = vdwg.mxu0
        %s743 = sadd.s32 %s33, 1
        %s744 = scvt.s32.f32 %s743
        %v745 = vld [vmem:[%s518] sm:$0xff]
        %v746 = vstv %s744
        %v747 = vsub.f32 %v746, %v745
        %v748 = vld [vmem:[%s4] sm:$0xff]
        %vm749 = vcmask 64512
        %v751 = vsel %vm749, %v747, 0
        %753 = vmatprep.subr.mxu0 0.0
        %754 = vmatpush1.msra.mxu0 %v748
        %755 = vmatprep.subr.mxu0 0.0
        %756 = vmatpush1.msra.mxu0 0.0
        %757 = vmatprep.subr.mxu0 0.0
        %758 = vmatpush1.msra.mxu0 0.0
        %759 = vmatprep.subr.mxu0 0.0
        %760 = vmatpush1.msra.mxu0 0.0
        %761 = vmatprep.subr.mxu0 0.0
        %762 = vmatpush1.msra.mxu0 0.0
        %763 = vmatprep.subr.mxu0 0.0
        %764 = vmatpush1.msra.mxu0 0.0
        %765 = vmatprep.subr.mxu0 0.0
        %766 = vmatpush1.msra.mxu0 0.0
        %767 = vmatprep.subr.mxu0 0.0
        %768 = vmatpush1.msra.mxu0 0.0
        %769 = vmatprep.subr.mxu0 0.0
        %770 = vmatpush1.msra.mxu0 0.0
        %771 = vmatprep.subr.mxu0 0.0
        %772 = vmatpush1.msra.mxu0 0.0
        %773 = vmatprep.subr.mxu0 0.0
        %774 = vmatpush1.msra.mxu0 0.0
        %775 = vmatprep.subr.mxu0 0.0
        %776 = vmatpush1.msra.mxu0 0.0
        %777 = vmatprep.subr.mxu0 0.0
        %778 = vmatpush1.msra.mxu0 0.0
        %779 = vmatprep.subr.mxu0 0.0
        %780 = vmatpush1.msra.mxu0 0.0
        %781 = vmatprep.subr.mxu0 0.0
        %782 = vmatpush1.msra.mxu0 0.0
        %783 = vmatprep.subr.mxu0 0.0
        %784 = vmatpush1.msra.mxu0 0.0
        %785 = vmatprep.subr.mxu0 0.0
        %786 = vmatpush1.msra.mxu0 0.0
        %787 = vmatprep.subr.mxu0 0.0
        %788 = vmatpush1.msra.mxu0 0.0
        %789 = vmatprep.subr.mxu0 0.0
        %790 = vmatpush1.msra.mxu0 0.0
        %791 = vmatprep.subr.mxu0 0.0
        %792 = vmatpush1.msra.mxu0 0.0
        %793 = vmatprep.subr.mxu0 0.0
        %794 = vmatpush1.msra.mxu0 0.0
        %795 = vmatprep.subr.mxu0 0.0
        %796 = vmatpush1.msra.mxu0 0.0
        %797 = vmatprep.subr.mxu0 0.0
        %798 = vmatpush1.msra.mxu0 0.0
        %799 = vmatprep.subr.mxu0 0.0
        %800 = vmatpush1.msra.mxu0 0.0
        %801 = vmatprep.subr.mxu0 0.0
        %802 = vmatpush1.msra.mxu0 0.0
        %803 = vmatprep.subr.mxu0 0.0
        %804 = vmatpush1.msra.mxu0 0.0
        %805 = vmatprep.subr.mxu0 0.0
        %806 = vmatpush1.msra.mxu0 0.0
        %807 = vmatprep.subr.mxu0 0.0
        %808 = vmatpush1.msra.mxu0 0.0
        %809 = vmatprep.subr.mxu0 0.0
        %810 = vmatpush1.msra.mxu0 0.0
        %811 = vmatprep.subr.mxu0 0.0
        %812 = vmatpush1.msra.mxu0 0.0
        %813 = vmatprep.subr.mxu0 0.0
        %814 = vmatpush1.msra.mxu0 0.0
        %815 = vmatprep.subr.mxu0 0.0
        %816 = vmatpush1.msra.mxu0 0.0
        %817 = vmatprep.mubr.f32.mxu0 0.0
        %818 = vmatmul.mubr.f32.gmra.mrb[0].mxu0 %v751
        %v819 = vpop.f32.mrb[0].mxu0
        %v820 = vadd.f32 0.0, %v819
        %v821 = vpop.f32.mrb[0].mxu0
        %822 = vdwg.mxu0
        %v823 = vld [vmem:[%s5] sm:$0xff]
        %v824 = vld [vmem:[%s5 + $0x8] sm:$0xff]
        %v825 = vld [vmem:[%s5 + $0x10] sm:$0xff]
        %v826 = vld [vmem:[%s5 + $0x18] sm:$0xff]
        %v827 = vld [vmem:[%s5 + $0x20] sm:$0xff]
        %v828 = vld [vmem:[%s5 + $0x28] sm:$0xff]
        %v829 = vld [vmem:[%s5 + $0x30] sm:$0xff]
        %v830 = vld [vmem:[%s5 + $0x38] sm:$0xff]
        %v831 = vld [vmem:[%s5 + $0x40] sm:$0xff]
        %v832 = vld [vmem:[%s5 + $0x48] sm:$0xff]
        %v833 = vld [vmem:[%s5 + $0x50] sm:$0xff]
        %v834 = vld [vmem:[%s5 + $0x58] sm:$0xff]
        %v835 = vld [vmem:[%s5 + $0x60] sm:$0xff]
        %v836 = vld [vmem:[%s5 + $0x68] sm:$0xff]
        %v837 = vld [vmem:[%s5 + $0x70] sm:$0xff]
        %v838 = vld [vmem:[%s5 + $0x78] sm:$0xff]
        %vm839 = vcmask 261120
        %v840 = vsel %vm839, %v578, 0
        %v843 = vsel %vm839, %v823, 0
        %v846 = vsel %vm839, %v824, 0
        %v849 = vsel %vm839, %v825, 0
        %v852 = vsel %vm839, %v826, 0
        %v855 = vsel %vm839, %v827, 0
        %v858 = vsel %vm839, %v828, 0
        %v861 = vsel %vm839, %v829, 0
        %v864 = vsel %vm839, %v830, 0
        %v867 = vsel %vm839, %v831, 0
        %v870 = vsel %vm839, %v832, 0
        %v873 = vsel %vm839, %v833, 0
        %v876 = vsel %vm839, %v834, 0
        %v879 = vsel %vm839, %v835, 0
        %v882 = vsel %vm839, %v836, 0
        %v885 = vsel %vm839, %v837, 0
        %v888 = vsel %vm839, %v838, 0
        %890 = vmatprep.subr.mxu0 0.0
        %891 = vmatpush1.xpose.msra.mxu0 %v843
        %892 = vmatprep.subr.mxu0 0.0
        %893 = vmatpush1.xpose.msra.mxu0 %v846
        %894 = vmatprep.subr.mxu0 0.0
        %895 = vmatpush1.xpose.msra.mxu0 %v849
        %896 = vmatprep.subr.mxu0 0.0
        %897 = vmatpush1.xpose.msra.mxu0 %v852
        %898 = vmatprep.subr.mxu0 0.0
        %899 = vmatpush1.xpose.msra.mxu0 %v855
        %900 = vmatprep.subr.mxu0 0.0
        %901 = vmatpush1.xpose.msra.mxu0 %v858
        %902 = vmatprep.subr.mxu0 0.0
        %903 = vmatpush1.xpose.msra.mxu0 %v861
        %904 = vmatprep.subr.mxu0 0.0
        %905 = vmatpush1.xpose.msra.mxu0 %v864
        %906 = vmatprep.subr.mxu0 0.0
        %907 = vmatpush1.xpose.msra.mxu0 %v867
        %908 = vmatprep.subr.mxu0 0.0
        %909 = vmatpush1.xpose.msra.mxu0 %v870
        %910 = vmatprep.subr.mxu0 0.0
        %911 = vmatpush1.xpose.msra.mxu0 %v873
        %912 = vmatprep.subr.mxu0 0.0
        %913 = vmatpush1.xpose.msra.mxu0 %v876
        %914 = vmatprep.subr.mxu0 0.0
        %915 = vmatpush1.xpose.msra.mxu0 %v879
        %916 = vmatprep.subr.mxu0 0.0
        %917 = vmatpush1.xpose.msra.mxu0 %v882
        %918 = vmatprep.subr.mxu0 0.0
        %919 = vmatpush1.xpose.msra.mxu0 %v885
        %920 = vmatprep.subr.mxu0 0.0
        %921 = vmatpush1.xpose.msra.mxu0 %v888
        %922 = vmatprep.subr.mxu0 0.0
        %923 = vmatpush1.xpose.msra.mxu0 0.0
        %924 = vmatprep.subr.mxu0 0.0
        %925 = vmatpush1.xpose.msra.mxu0 0.0
        %926 = vmatprep.subr.mxu0 0.0
        %927 = vmatpush1.xpose.msra.mxu0 0.0
        %928 = vmatprep.subr.mxu0 0.0
        %929 = vmatpush1.xpose.msra.mxu0 0.0
        %930 = vmatprep.subr.mxu0 0.0
        %931 = vmatpush1.xpose.msra.mxu0 0.0
        %932 = vmatprep.subr.mxu0 0.0
        %933 = vmatpush1.xpose.msra.mxu0 0.0
        %934 = vmatprep.subr.mxu0 0.0
        %935 = vmatpush1.xpose.msra.mxu0 0.0
        %936 = vmatprep.subr.mxu0 0.0
        %937 = vmatpush1.xpose.msra.mxu0 0.0
        %938 = vmatprep.subr.mxu0 0.0
        %939 = vmatpush1.xpose.msra.mxu0 0.0
        %940 = vmatprep.subr.mxu0 0.0
        %941 = vmatpush1.xpose.msra.mxu0 0.0
        %942 = vmatprep.subr.mxu0 0.0
        %943 = vmatpush1.xpose.msra.mxu0 0.0
        %944 = vmatprep.subr.mxu0 0.0
        %945 = vmatpush1.xpose.msra.mxu0 0.0
        %946 = vmatprep.subr.mxu0 0.0
        %947 = vmatpush1.xpose.msra.mxu0 0.0
        %948 = vmatprep.subr.mxu0 0.0
        %949 = vmatpush1.xpose.msra.mxu0 0.0
        %950 = vmatprep.subr.mxu0 0.0
        %951 = vmatpush1.xpose.msra.mxu0 0.0
        %952 = vmatprep.subr.mxu0 0.0
        %953 = vmatpush1.xpose.msra.mxu0 0.0
        %954 = vmatprep.mubr.f32.mxu0 0.0
        %955 = vmatmul.mubr.f32.gmra.mrb[0].mxu0 %v840
        %v956 = vpop.f32.mrb[0].mxu0
        %v957 = vadd.f32 0.0, %v956
        %v958 = vpop.f32.mrb[0].mxu0
        %959 = vdwg.mxu0
        %v960 = vld [vmem:[%s6] sm:$0xff]
        %v961 = vld [vmem:[%s6 + $0x8] sm:$0xff]
        %v962 = vld [vmem:[%s6 + $0x10] sm:$0xff]
        %v963 = vld [vmem:[%s6 + $0x18] sm:$0xff]
        %v964 = vld [vmem:[%s6 + $0x20] sm:$0xff]
        %v965 = vld [vmem:[%s6 + $0x28] sm:$0xff]
        %v966 = vld [vmem:[%s6 + $0x30] sm:$0xff]
        %v967 = vld [vmem:[%s6 + $0x38] sm:$0xff]
        %v968 = vld [vmem:[%s6 + $0x40] sm:$0xff]
        %v969 = vld [vmem:[%s6 + $0x48] sm:$0xff]
        %v970 = vld [vmem:[%s6 + $0x50] sm:$0xff]
        %v971 = vld [vmem:[%s6 + $0x58] sm:$0xff]
        %v972 = vld [vmem:[%s6 + $0x60] sm:$0xff]
        %v973 = vld [vmem:[%s6 + $0x68] sm:$0xff]
        %v974 = vld [vmem:[%s6 + $0x70] sm:$0xff]
        %v975 = vld [vmem:[%s6 + $0x78] sm:$0xff]
        %v977 = vsel %vm839, %v960, 0
        %v980 = vsel %vm839, %v961, 0
        %v983 = vsel %vm839, %v962, 0
        %v986 = vsel %vm839, %v963, 0
        %v989 = vsel %vm839, %v964, 0
        %v992 = vsel %vm839, %v965, 0
        %v995 = vsel %vm839, %v966, 0
        %v998 = vsel %vm839, %v967, 0
        %v1001 = vsel %vm839, %v968, 0
        %v1004 = vsel %vm839, %v969, 0
        %v1007 = vsel %vm839, %v970, 0
        %v1010 = vsel %vm839, %v971, 0
        %v1013 = vsel %vm839, %v972, 0
        %v1016 = vsel %vm839, %v973, 0
        %v1019 = vsel %vm839, %v974, 0
        %v1022 = vsel %vm839, %v975, 0
        %1024 = vmatprep.subr.mxu0 0.0
        %1025 = vmatpush1.xpose.msra.mxu0 %v977
        %1026 = vmatprep.subr.mxu0 0.0
        %1027 = vmatpush1.xpose.msra.mxu0 %v980
        %1028 = vmatprep.subr.mxu0 0.0
        %1029 = vmatpush1.xpose.msra.mxu0 %v983
        %1030 = vmatprep.subr.mxu0 0.0
        %1031 = vmatpush1.xpose.msra.mxu0 %v986
        %1032 = vmatprep.subr.mxu0 0.0
        %1033 = vmatpush1.xpose.msra.mxu0 %v989
        %1034 = vmatprep.subr.mxu0 0.0
        %1035 = vmatpush1.xpose.msra.mxu0 %v992
        %1036 = vmatprep.subr.mxu0 0.0
        %1037 = vmatpush1.xpose.msra.mxu0 %v995
        %1038 = vmatprep.subr.mxu0 0.0
        %1039 = vmatpush1.xpose.msra.mxu0 %v998
        %1040 = vmatprep.subr.mxu0 0.0
        %1041 = vmatpush1.xpose.msra.mxu0 %v1001
        %1042 = vmatprep.subr.mxu0 0.0
        %1043 = vmatpush1.xpose.msra.mxu0 %v1004
        %1044 = vmatprep.subr.mxu0 0.0
        %1045 = vmatpush1.xpose.msra.mxu0 %v1007
        %1046 = vmatprep.subr.mxu0 0.0
        %1047 = vmatpush1.xpose.msra.mxu0 %v1010
        %1048 = vmatprep.subr.mxu0 0.0
        %1049 = vmatpush1.xpose.msra.mxu0 %v1013
        %1050 = vmatprep.subr.mxu0 0.0
        %1051 = vmatpush1.xpose.msra.mxu0 %v1016
        %1052 = vmatprep.subr.mxu0 0.0
        %1053 = vmatpush1.xpose.msra.mxu0 %v1019
        %1054 = vmatprep.subr.mxu0 0.0
        %1055 = vmatpush1.xpose.msra.mxu0 %v1022
        %1056 = vmatprep.subr.mxu0 0.0
        %1057 = vmatpush1.xpose.msra.mxu0 0.0
        %1058 = vmatprep.subr.mxu0 0.0
        %1059 = vmatpush1.xpose.msra.mxu0 0.0
        %1060 = vmatprep.subr.mxu0 0.0
        %1061 = vmatpush1.xpose.msra.mxu0 0.0
        %1062 = vmatprep.subr.mxu0 0.0
        %1063 = vmatpush1.xpose.msra.mxu0 0.0
        %1064 = vmatprep.subr.mxu0 0.0
        %1065 = vmatpush1.xpose.msra.mxu0 0.0
        %1066 = vmatprep.subr.mxu0 0.0
        %1067 = vmatpush1.xpose.msra.mxu0 0.0
        %1068 = vmatprep.subr.mxu0 0.0
        %1069 = vmatpush1.xpose.msra.mxu0 0.0
        %1070 = vmatprep.subr.mxu0 0.0
        %1071 = vmatpush1.xpose.msra.mxu0 0.0
        %1072 = vmatprep.subr.mxu0 0.0
        %1073 = vmatpush1.xpose.msra.mxu0 0.0
        %1074 = vmatprep.subr.mxu0 0.0
        %1075 = vmatpush1.xpose.msra.mxu0 0.0
        %1076 = vmatprep.subr.mxu0 0.0
        %1077 = vmatpush1.xpose.msra.mxu0 0.0
        %1078 = vmatprep.subr.mxu0 0.0
        %1079 = vmatpush1.xpose.msra.mxu0 0.0
        %1080 = vmatprep.subr.mxu0 0.0
        %1081 = vmatpush1.xpose.msra.mxu0 0.0
        %1082 = vmatprep.subr.mxu0 0.0
        %1083 = vmatpush1.xpose.msra.mxu0 0.0
        %1084 = vmatprep.subr.mxu0 0.0
        %1085 = vmatpush1.xpose.msra.mxu0 0.0
        %1086 = vmatprep.subr.mxu0 0.0
        %1087 = vmatpush1.xpose.msra.mxu0 0.0
        %1088 = vmatprep.mubr.f32.mxu0 0.0
        %1089 = vmatmul.mubr.f32.gmra.mrb[0].mxu0 %v840
        %v1090 = vpop.f32.mrb[0].mxu0
        %v1091 = vadd.f32 0.0, %v1090
        %v1092 = vpop.f32.mrb[0].mxu0
        %1093 = vdwg.mxu0
        %v1094 = vand.u32 2147483647, %v820
        %vm1095 = vcmp.le.f32.partialorder %v1094, 0.7853982
        %vm1096 = vcmp.lt.s32.totalorder %v820, 0
        %v1097 = vand.u32 %v820, 2139095040
        %v1098 = vshrl.u32 %v1097, 23
        %v1099 = vsub.s32 %v1098, 127
        %v1100 = vand.u32 2147483647, %v820
        %v1101 = vand.u32 %v1100, 8388607
        %v1102 = vor.u32 %v1101, 8388608
        %v1103 = vsub.s32 0, %v1102
        %v1104 = vadd.s32 %v1099, 1
        %vm1105 = vcmp.gt.s32.totalorder %v1104, 0
        %v1106 = vsel %vm1105, %v1104, 0
        %v1107 = vshrl.u32 %v1106, 5
        %v1108 = vand.u32 %v1106, 31
        %v1109 = vsub.s32 32, %v1108
        %v1110 = vshrl.u32 683565275, %v1109
        %v1111 = vshll.u32 683565275, %v1108
        %v1112 = vshrl.u32 2475754826, %v1109
        %v1113 = vor.u32 %v1111, %v1112
        %v1114 = vshll.u32 2475754826, %v1108
        %v1115 = vshrl.u32 2131351028, %v1109
        %v1116 = vor.u32 %v1114, %v1115
        %v1117 = vshll.u32 2131351028, %v1108
        %v1118 = vshrl.u32 2102212464, %v1109
        %v1119 = vor.u32 %v1117, %v1118
        %v1120 = vshll.u32 2102212464, %v1108
        %v1121 = vshrl.u32 920167782, %v1109
        %v1122 = vor.u32 %v1120, %v1121
        %v1123 = vshll.u32 920167782, %v1108
        %v1124 = vshrl.u32 1326507024, %v1109
        %v1125 = vor.u32 %v1123, %v1124
        %vm1126 = vcmp.lt.s32.totalorder %v1107, 1
        %vm1127 = vcmp.lt.s32.totalorder %v1107, 2
        %vm1128 = vcmp.lt.s32.totalorder %v1107, 3
        %vm1129 = vcmp.lt.s32.totalorder %v1107, 4
        %v1130 = vsel %vm1126, %v1110, %v1113
        %v1131 = vsel %vm1129, %v1119, 2102212464
        %v1132 = vsel %vm1128, %v1116, %v1131
        %v1133 = vsel %vm1127, %v1130, %v1132
        %v1134 = vsel %vm1126, %v1113, %v1116
        %v1135 = vsel %vm1129, %v1122, 920167782
        %v1136 = vsel %vm1128, %v1119, %v1135
        %v1137 = vsel %vm1127, %v1134, %v1136
        %v1138 = vsel %vm1126, %v1116, %v1119
        %v1139 = vsel %vm1129, %v1125, 1326507024
        %v1140 = vsel %vm1128, %v1122, %v1139
        %v1141 = vsel %vm1127, %v1138, %v1140
        %v1142 = vshll.u32 %v1102, 8
        %v1143 = vmul.u32.u64.compose %v1142, %v1141
        %v1144 = vextract.low.u32 %v1143
        %v1145 = vextract.high.u32 %v1143
        %v1146 = vmul.u32.u64.compose %v1142, %v1137
        %v1147 = vextract.low.u32 %v1146
        %v1148 = vextract.high.u32 %v1146
        %v1149 = vmul.u32 %v1142, %v1133
        %v1150 = vadd.s32 %v1145, %v1147
        %vm1151 = vc.u32 %v1145, %v1147
        %v1152 = vadd.s32 %v1148, 1
        %v1153 = vsel %vm1151, %v1152, %v1148
        %v1154 = vadd.s32 %v1149, %v1153
        %v1155 = vadd.s32 %v1154, 536870912
        %v1156 = vshrl.u32 %v1155, 30
        %v1157 = vshll.u32 %v1156, 30
        %v1158 = vsub.s32 %v1154, %v1157
        %vm1159 = vcmp.lt.s32.totalorder %v1158, 0
        %v1160 = vsub.s32 0, %v1158
        %v1161 = vsel %vm1159, %v1160, %v1158
        %v1162 = vclz %v1161
        %v1163 = vsub.s32 %v1162, 2
        %vm1164 = vcmp.gt.s32.totalorder 0, %v1163
        %v1165 = vsel %vm1164, 0, %v1163
        %v1166 = vsub.s32 32, %v1165
        %v1167 = vshll.u32 %v1158, %v1165
        %v1168 = vshrl.u32 %v1150, %v1166
        %v1169 = vor.u32 %v1167, %v1168
        %v1170 = vsub.s32 4294967266, %v1165
        %v1171 = vadd.s32 %v1170, 127
        %v1172 = vshll.u32 %v1171, 23
        %v1173 = vor.u32 4788187, %v1172
        %v1174 = vand.u32 2147483647, %v1173
        %v1176 = vcvt.s32.f32 %v1169
        %v1177 = vmul.f32 %v1176, %v1174
        %v1178 = vxor.u32 %v1177, 2147483648
        %v1179 = vsel %vm1096, %v1178, %v1177
        %v1180 = vsub.s32 4, %v1156
        %v1181 = vsel %vm1096, %v1180, %v1156
        %v1182 = vsel %vm1095, %v820, %v1179
        %v1183 = vsel %vm1095, 0, %v1181
        %v1184 = vcosq.f32.pop %v1182
        %v1185 = vsinq.f32.pop %v1182
        %vm1186 = vweird.f32 %v820
        %v1187 = vadd.s32 %v1183, 3
        %v1188 = vand.u32 %v1187, 3
        %vm1189 = vcmp.lt.s32.totalorder %v1188, 2
        %vm1190 = vcmp.eq.s32.totalorder %v1188, 0
        %v1191 = vxor.u32 %v1185, 2147483648
        %v1192 = vsel %vm1190, %v1184, %v1191
        %vm1193 = vcmp.eq.s32.totalorder %v1188, 2
        %v1194 = vxor.u32 %v1184, 2147483648
        %v1195 = vsel %vm1193, %v1194, %v1185
        %v1196 = vsel %vm1189, %v1192, %v1195
        %v1197 = vsel %vm1186, nan, %v1196
        %v1198 = vlaneseq
        %v1199 = vshrl.u32 %v1198, 7
        %v1200 = vsub.s32 0, %v1199
        %v1201 = vrot.slane %v957, %v1200
        %v1202 = vmul.f32 %v1197, %v1201
        %v1203 = vand.u32 2147483647, %v820
        %vm1204 = vcmp.le.f32.partialorder %v1203, 0.7853982
        %vm1205 = vcmp.lt.s32.totalorder %v820, 0
        %v1206 = vand.u32 %v820, 2139095040
        %v1207 = vshrl.u32 %v1206, 23
        %v1208 = vsub.s32 %v1207, 127
        %v1209 = vand.u32 2147483647, %v820
        %v1210 = vand.u32 %v1209, 8388607
        %v1211 = vor.u32 %v1210, 8388608
        %v1212 = vsub.s32 0, %v1211
        %v1213 = vadd.s32 %v1208, 1
        %vm1214 = vcmp.gt.s32.totalorder %v1213, 0
        %v1215 = vsel %vm1214, %v1213, 0
        %v1216 = vshrl.u32 %v1215, 5
        %v1217 = vand.u32 %v1215, 31
        %v1218 = vsub.s32 32, %v1217
        %v1219 = vshrl.u32 683565275, %v1218
        %v1220 = vshll.u32 683565275, %v1217
        %v1221 = vshrl.u32 2475754826, %v1218
        %v1222 = vor.u32 %v1220, %v1221
        %v1223 = vshll.u32 2475754826, %v1217
        %v1224 = vshrl.u32 2131351028, %v1218
        %v1225 = vor.u32 %v1223, %v1224
        %v1226 = vshll.u32 2131351028, %v1217
        %v1227 = vshrl.u32 2102212464, %v1218
        %v1228 = vor.u32 %v1226, %v1227
        %v1229 = vshll.u32 2102212464, %v1217
        %v1230 = vshrl.u32 920167782, %v1218
        %v1231 = vor.u32 %v1229, %v1230
        %v1232 = vshll.u32 920167782, %v1217
        %v1233 = vshrl.u32 1326507024, %v1218
        %v1234 = vor.u32 %v1232, %v1233
        %vm1235 = vcmp.lt.s32.totalorder %v1216, 1
        %vm1236 = vcmp.lt.s32.totalorder %v1216, 2
        %vm1237 = vcmp.lt.s32.totalorder %v1216, 3
        %vm1238 = vcmp.lt.s32.totalorder %v1216, 4
        %v1239 = vsel %vm1235, %v1219, %v1222
        %v1240 = vsel %vm1238, %v1228, 2102212464
        %v1241 = vsel %vm1237, %v1225, %v1240
        %v1242 = vsel %vm1236, %v1239, %v1241
        %v1243 = vsel %vm1235, %v1222, %v1225
        %v1244 = vsel %vm1238, %v1231, 920167782
        %v1245 = vsel %vm1237, %v1228, %v1244
        %v1246 = vsel %vm1236, %v1243, %v1245
        %v1247 = vsel %vm1235, %v1225, %v1228
        %v1248 = vsel %vm1238, %v1234, 1326507024
        %v1249 = vsel %vm1237, %v1231, %v1248
        %v1250 = vsel %vm1236, %v1247, %v1249
        %v1251 = vshll.u32 %v1211, 8
        %v1252 = vmul.u32.u64.compose %v1251, %v1250
        %v1253 = vextract.low.u32 %v1252
        %v1254 = vextract.high.u32 %v1252
        %v1255 = vmul.u32.u64.compose %v1251, %v1246
        %v1256 = vextract.low.u32 %v1255
        %v1257 = vextract.high.u32 %v1255
        %v1258 = vmul.u32 %v1251, %v1242
        %v1259 = vadd.s32 %v1254, %v1256
        %vm1260 = vc.u32 %v1254, %v1256
        %v1261 = vadd.s32 %v1257, 1
        %v1262 = vsel %vm1260, %v1261, %v1257
        %v1263 = vadd.s32 %v1258, %v1262
        %v1264 = vadd.s32 %v1263, 536870912
        %v1265 = vshrl.u32 %v1264, 30
        %v1266 = vshll.u32 %v1265, 30
        %v1267 = vsub.s32 %v1263, %v1266
        %vm1268 = vcmp.lt.s32.totalorder %v1267, 0
        %v1269 = vsub.s32 0, %v1267
        %v1270 = vsel %vm1268, %v1269, %v1267
        %v1271 = vclz %v1270
        %v1272 = vsub.s32 %v1271, 2
        %vm1273 = vcmp.gt.s32.totalorder 0, %v1272
        %v1274 = vsel %vm1273, 0, %v1272
        %v1275 = vsub.s32 32, %v1274
        %v1276 = vshll.u32 %v1267, %v1274
        %v1277 = vshrl.u32 %v1259, %v1275
        %v1278 = vor.u32 %v1276, %v1277
        %v1279 = vsub.s32 4294967266, %v1274
        %v1280 = vadd.s32 %v1279, 127
        %v1281 = vshll.u32 %v1280, 23
        %v1282 = vor.u32 4788187, %v1281
        %v1283 = vand.u32 2147483647, %v1282
        %v1285 = vcvt.s32.f32 %v1278
        %v1286 = vmul.f32 %v1285, %v1283
        %v1287 = vxor.u32 %v1286, 2147483648
        %v1288 = vsel %vm1205, %v1287, %v1286
        %v1289 = vsub.s32 4, %v1265
        %v1290 = vsel %vm1205, %v1289, %v1265
        %v1291 = vsel %vm1204, %v820, %v1288
        %v1292 = vsel %vm1204, 0, %v1290
        %v1293 = vcosq.f32.pop %v1291
        %v1294 = vsinq.f32.pop %v1291
        %vm1295 = vweird.f32 %v820
        %v1296 = vand.u32 %v1292, 3
        %vm1297 = vcmp.lt.s32.totalorder %v1296, 2
        %vm1298 = vcmp.eq.s32.totalorder %v1296, 0
        %v1299 = vxor.u32 %v1294, 2147483648
        %v1300 = vsel %vm1298, %v1293, %v1299
        %vm1301 = vcmp.eq.s32.totalorder %v1296, 2
        %v1302 = vxor.u32 %v1293, 2147483648
        %v1303 = vsel %vm1301, %v1302, %v1294
        %v1304 = vsel %vm1297, %v1300, %v1303
        %v1305 = vsel %vm1295, nan, %v1304
        %v1306 = vlaneseq
        %v1307 = vshrl.u32 %v1306, 7
        %v1308 = vsub.s32 0, %v1307
        %v1309 = vrot.slane %v1091, %v1308
        %v1310 = vmul.f32 %v1305, %v1309
        %v1311 = vadd.f32 %v1202, %v1310
        %v1312 = vld [vmem:[#allocation10] sm:$0xff]
        %v1313 = vld [vmem:[#allocation10 + $0x8] sm:$0xff]
        %v1314 = vld [vmem:[#allocation10 + $0x10] sm:$0xff]
        %v1315 = vld [vmem:[#allocation10 + $0x18] sm:$0xff]
        %v1316 = vld [vmem:[#allocation10 + $0x20] sm:$0xff]
        %v1317 = vld [vmem:[#allocation10 + $0x28] sm:$0xff]
        %v1318 = vld [vmem:[#allocation10 + $0x30] sm:$0xff]
        %v1319 = vld [vmem:[#allocation10 + $0x38] sm:$0xff]
        %v1320 = vld [vmem:[#allocation10 + $0x40] sm:$0xff]
        %v1321 = vld [vmem:[#allocation10 + $0x48] sm:$0xff]
        %v1322 = vld [vmem:[#allocation10 + $0x50] sm:$0xff]
        %v1323 = vld [vmem:[#allocation10 + $0x58] sm:$0xff]
        %v1324 = vld [vmem:[#allocation10 + $0x60] sm:$0xff]
        %v1325 = vld [vmem:[#allocation10 + $0x68] sm:$0xff]
        %v1326 = vld [vmem:[#allocation10 + $0x70] sm:$0xff]
        %v1327 = vld [vmem:[#allocation10 + $0x78] sm:$0xff]
        %1328 = vmatprep.subr.mxu0 0.0
        %1329 = vmatpush1.msra.mxu0 %v1312
        %1330 = vmatprep.subr.mxu0 0.0
        %1331 = vmatpush1.msra.mxu0 %v1313
        %1332 = vmatprep.subr.mxu0 0.0
        %1333 = vmatpush1.msra.mxu0 %v1314
        %1334 = vmatprep.subr.mxu0 0.0
        %1335 = vmatpush1.msra.mxu0 %v1315
        %1336 = vmatprep.subr.mxu0 0.0
        %1337 = vmatpush1.msra.mxu0 %v1316
        %1338 = vmatprep.subr.mxu0 0.0
        %1339 = vmatpush1.msra.mxu0 %v1317
        %1340 = vmatprep.subr.mxu0 0.0
        %1341 = vmatpush1.msra.mxu0 %v1318
        %1342 = vmatprep.subr.mxu0 0.0
        %1343 = vmatpush1.msra.mxu0 %v1319
        %1344 = vmatprep.subr.mxu0 0.0
        %1345 = vmatpush1.msra.mxu0 %v1320
        %1346 = vmatprep.subr.mxu0 0.0
        %1347 = vmatpush1.msra.mxu0 %v1321
        %1348 = vmatprep.subr.mxu0 0.0
        %1349 = vmatpush1.msra.mxu0 %v1322
        %1350 = vmatprep.subr.mxu0 0.0
        %1351 = vmatpush1.msra.mxu0 %v1323
        %1352 = vmatprep.subr.mxu0 0.0
        %1353 = vmatpush1.msra.mxu0 %v1324
        %1354 = vmatprep.subr.mxu0 0.0
        %1355 = vmatpush1.msra.mxu0 %v1325
        %1356 = vmatprep.subr.mxu0 0.0
        %1357 = vmatpush1.msra.mxu0 %v1326
        %1358 = vmatprep.subr.mxu0 0.0
        %1359 = vmatpush1.msra.mxu0 %v1327
        %1360 = vmatprep.subr.mxu0 0.0
        %1361 = vmatpush1.msra.mxu0 0.0
        %1362 = vmatprep.subr.mxu0 0.0
        %1363 = vmatpush1.msra.mxu0 0.0
        %1364 = vmatprep.subr.mxu0 0.0
        %1365 = vmatpush1.msra.mxu0 0.0
        %1366 = vmatprep.subr.mxu0 0.0
        %1367 = vmatpush1.msra.mxu0 0.0
        %1368 = vmatprep.subr.mxu0 0.0
        %1369 = vmatpush1.msra.mxu0 0.0
        %1370 = vmatprep.subr.mxu0 0.0
        %1371 = vmatpush1.msra.mxu0 0.0
        %1372 = vmatprep.subr.mxu0 0.0
        %1373 = vmatpush1.msra.mxu0 0.0
        %1374 = vmatprep.subr.mxu0 0.0
        %1375 = vmatpush1.msra.mxu0 0.0
        %1376 = vmatprep.subr.mxu0 0.0
        %1377 = vmatpush1.msra.mxu0 0.0
        %1378 = vmatprep.subr.mxu0 0.0
        %1379 = vmatpush1.msra.mxu0 0.0
        %1380 = vmatprep.subr.mxu0 0.0
        %1381 = vmatpush1.msra.mxu0 0.0
        %1382 = vmatprep.subr.mxu0 0.0
        %1383 = vmatpush1.msra.mxu0 0.0
        %1384 = vmatprep.subr.mxu0 0.0
        %1385 = vmatpush1.msra.mxu0 0.0
        %1386 = vmatprep.subr.mxu0 0.0
        %1387 = vmatpush1.msra.mxu0 0.0
        %1388 = vmatprep.subr.mxu0 0.0
        %1389 = vmatpush1.msra.mxu0 0.0
        %1390 = vmatprep.subr.mxu0 0.0
        %1391 = vmatpush1.msra.mxu0 0.0
        %1392 = vmatprep.mubr.f32.mxu0 0.0
        %1393 = vmatmul.mubr.f32.gmra.mrb[0].mxu0 %v1311
        %v1394 = vpop.f32.mrb[0].mxu0
        %v1395 = vadd.f32 0.0, %v1394
        %v1396 = vpop.f32.mrb[0].mxu0
        %1397 = vdwg.mxu0
        %v1398 = vlaneseq
        %v1399 = vshrl.u32 %v1398, 7
        %v1400 = vsub.s32 0, %v1399
        %v1401 = vrot.slane %v740, %v1400
        %v1402 = vadd.f32 %v665, %v1401
        %v1403 = vadd.f32 %v1402, %v1395
        %vm1404 = vcmp.ge.f32.partialorder %v1403, 0.0
        %v1405 = vmul.f32 %v1403, 0.05
        %v1406 = vsel %vm1404, %v1403, %v1405
        %v1407 = vld [vmem:[%s509] sm:$0xff]
        %vm1408 = vcmp.gt.f32.partialorder %v1407, 0.0
        %v1409 = vsel %vm1408, %v1406, -9e+15
        %v1410 = vsel %vm749, %v1409, -inf
        %1411 = vmax.xlane.f32.xlu0 %v1410
        %v1412 = vpop.xlane.xlu0 %1411
        %v1413 = vsub.f32 %v1409, %v1412
        %v1414 = vmul.f32 %v1413, 1.442695
        %v1415 = vpow.pop %v1414
        %v1416 = vsel %vm749, %v1415, 0.0
        %1417 = vadd.xlane.f32.xlu0 %v1416
        %v1418 = vpop.xlane.xlu0 %1417
        %v1419 = vrcp.pop %v1418
        %v1420 = vmul.f32 %v1415, %v1419
        %v1422 = vsel %vm749, %v1420, 0
        %1424 = vmatprep.subr.mxu0 0.0
        %1425 = vmatpush1.msra.mxu0 %v653
        %1426 = vmatprep.subr.mxu0 0.0
        %1427 = vmatpush1.msra.mxu0 0.0
        %1428 = vmatprep.subr.mxu0 0.0
        %1429 = vmatpush1.msra.mxu0 0.0
        %1430 = vmatprep.subr.mxu0 0.0
        %1431 = vmatpush1.msra.mxu0 0.0
        %1432 = vmatprep.subr.mxu0 0.0
        %1433 = vmatpush1.msra.mxu0 0.0
        %1434 = vmatprep.subr.mxu0 0.0
        %1435 = vmatpush1.msra.mxu0 0.0
        %1436 = vmatprep.subr.mxu0 0.0
        %1437 = vmatpush1.msra.mxu0 0.0
        %1438 = vmatprep.subr.mxu0 0.0
        %1439 = vmatpush1.msra.mxu0 0.0
        %1440 = vmatprep.subr.mxu0 0.0
        %1441 = vmatpush1.msra.mxu0 0.0
        %1442 = vmatprep.subr.mxu0 0.0
        %1443 = vmatpush1.msra.mxu0 0.0
        %1444 = vmatprep.subr.mxu0 0.0
        %1445 = vmatpush1.msra.mxu0 0.0
        %1446 = vmatprep.subr.mxu0 0.0
        %1447 = vmatpush1.msra.mxu0 0.0
        %1448 = vmatprep.subr.mxu0 0.0
        %1449 = vmatpush1.msra.mxu0 0.0
        %1450 = vmatprep.subr.mxu0 0.0
        %1451 = vmatpush1.msra.mxu0 0.0
        %1452 = vmatprep.subr.mxu0 0.0
        %1453 = vmatpush1.msra.mxu0 0.0
        %1454 = vmatprep.subr.mxu0 0.0
        %1455 = vmatpush1.msra.mxu0 0.0
        %1456 = vmatprep.subr.mxu0 0.0
        %1457 = vmatpush1.msra.mxu0 0.0
        %1458 = vmatprep.subr.mxu0 0.0
        %1459 = vmatpush1.msra.mxu0 0.0
        %1460 = vmatprep.subr.mxu0 0.0
        %1461 = vmatpush1.msra.mxu0 0.0
        %1462 = vmatprep.subr.mxu0 0.0
        %1463 = vmatpush1.msra.mxu0 0.0
        %1464 = vmatprep.subr.mxu0 0.0
        %1465 = vmatpush1.msra.mxu0 0.0
        %1466 = vmatprep.subr.mxu0 0.0
        %1467 = vmatpush1.msra.mxu0 0.0
        %1468 = vmatprep.subr.mxu0 0.0
        %1469 = vmatpush1.msra.mxu0 0.0
        %1470 = vmatprep.subr.mxu0 0.0
        %1471 = vmatpush1.msra.mxu0 0.0
        %1472 = vmatprep.subr.mxu0 0.0
        %1473 = vmatpush1.msra.mxu0 0.0
        %1474 = vmatprep.subr.mxu0 0.0
        %1475 = vmatpush1.msra.mxu0 0.0
        %1476 = vmatprep.subr.mxu0 0.0
        %1477 = vmatpush1.msra.mxu0 0.0
        %1478 = vmatprep.subr.mxu0 0.0
        %1479 = vmatpush1.msra.mxu0 0.0
        %1480 = vmatprep.subr.mxu0 0.0
        %1481 = vmatpush1.msra.mxu0 0.0
        %1482 = vmatprep.subr.mxu0 0.0
        %1483 = vmatpush1.msra.mxu0 0.0
        %1484 = vmatprep.subr.mxu0 0.0
        %1485 = vmatpush1.msra.mxu0 0.0
        %1486 = vmatprep.subr.mxu0 0.0
        %1487 = vmatpush1.msra.mxu0 0.0
        %1488 = vmatprep.mubr.f32.mxu0 0.0
        %1489 = vmatmul.mubr.f32.gmra.mrb[0].mxu0 %v1422
        %v1490 = vpop.f32.mrb[0].mxu0
        %v1491 = vadd.f32 %v653, %v1490
        %v1492 = vpop.f32.mrb[0].mxu0
        %1493 = vdwg.mxu0
        %v1494 = vsel %vm582, %v1491, 0.0
        %1495 = vadd.xlane.f32.xlu0 %v1494
        %v1496 = vpop.xlane.xlu0 %1495
        %v1497 = vrcp.pop 16.0
        %v1498 = vmul.f32 %v1496, %v1497
        %v1499 = vsub.f32 %v1491, %v1498
        %v1500 = vmul.f32 %v1499, %v1499
        %v1501 = vsel %vm582, %v1500, 0.0
        %1502 = vadd.xlane.f32.xlu0 %v1501
        %v1503 = vpop.xlane.xlu0 %1502
        %v1504 = vmul.f32 %v1503, %v1497
        %v1505 = vadd.f32 %v1504, 1e-06
        %v1506 = vrsqrt.pop %v1505
        %v1507 = vmul.f32 %v1499, %v1506
        %v1508 = vld [vmem:[%s3] sm:$0x1]
        %v1509 = vlaneseq
        %v1510 = vshrl.u32 %v1509, 7
        %v1511 = vsub.s32 0, %v1510
        %v1512 = vrot.slane %v1508, %v1511
        %v1513 = vmul.f32 %v1507, %v1512
        %v1514 = vld [vmem:[%s3 + $0x1] sm:$0x1]
        %v1515 = vlaneseq
        %v1516 = vshrl.u32 %v1515, 7
        %v1517 = vsub.s32 0, %v1516
        %v1518 = vrot.slane %v1514, %v1517
        %v1519 = vadd.f32 %v1513, %v1518
        %1520 = vst.msk [vmem:[%s565] sm:$0xff] %vm582, %v1519
        %1521 = vst.msk [vmem:[#allocation2] sm:$0xff] %vm582, %v1519
        %v1522 = vld [vmem:[%s9] sm:$0xff]
        %v1523 = vld [vmem:[%s9 + $0x8] sm:$0xff]
        %v1524 = vld [vmem:[%s9 + $0x10] sm:$0xff]
        %v1525 = vld [vmem:[%s9 + $0x18] sm:$0xff]
        %1526 = vmatprep.subr.mxu0 0.0
        %1527 = vmatpush1.msra.mxu0 %v1522
        %1528 = vmatprep.subr.mxu0 0.0
        %1529 = vmatpush1.msra.mxu0 %v1523
        %1530 = vmatprep.subr.mxu0 0.0
        %1531 = vmatpush1.msra.mxu0 %v1524
        %1532 = vmatprep.subr.mxu0 0.0
        %1533 = vmatpush1.msra.mxu0 %v1525
        %1534 = vmatprep.subr.mxu0 0.0
        %1535 = vmatpush1.msra.mxu0 0.0
        %1536 = vmatprep.subr.mxu0 0.0
        %1537 = vmatpush1.msra.mxu0 0.0
        %1538 = vmatprep.subr.mxu0 0.0
        %1539 = vmatpush1.msra.mxu0 0.0
        %1540 = vmatprep.subr.mxu0 0.0
        %1541 = vmatpush1.msra.mxu0 0.0
        %1542 = vmatprep.subr.mxu0 0.0
        %1543 = vmatpush1.msra.mxu0 0.0
        %1544 = vmatprep.subr.mxu0 0.0
        %1545 = vmatpush1.msra.mxu0 0.0
        %1546 = vmatprep.subr.mxu0 0.0
        %1547 = vmatpush1.msra.mxu0 0.0
        %1548 = vmatprep.subr.mxu0 0.0
        %1549 = vmatpush1.msra.mxu0 0.0
        %1550 = vmatprep.subr.mxu0 0.0
        %1551 = vmatpush1.msra.mxu0 0.0
        %1552 = vmatprep.subr.mxu0 0.0
        %1553 = vmatpush1.msra.mxu0 0.0
        %1554 = vmatprep.subr.mxu0 0.0
        %1555 = vmatpush1.msra.mxu0 0.0
        %1556 = vmatprep.subr.mxu0 0.0
        %1557 = vmatpush1.msra.mxu0 0.0
        %1558 = vmatprep.subr.mxu0 0.0
        %1559 = vmatpush1.msra.mxu0 0.0
        %1560 = vmatprep.subr.mxu0 0.0
        %1561 = vmatpush1.msra.mxu0 0.0
        %1562 = vmatprep.subr.mxu0 0.0
        %1563 = vmatpush1.msra.mxu0 0.0
        %1564 = vmatprep.subr.mxu0 0.0
        %1565 = vmatpush1.msra.mxu0 0.0
        %1566 = vmatprep.subr.mxu0 0.0
        %1567 = vmatpush1.msra.mxu0 0.0
        %1568 = vmatprep.subr.mxu0 0.0
        %1569 = vmatpush1.msra.mxu0 0.0
        %1570 = vmatprep.subr.mxu0 0.0
        %1571 = vmatpush1.msra.mxu0 0.0
        %1572 = vmatprep.subr.mxu0 0.0
        %1573 = vmatpush1.msra.mxu0 0.0
        %1574 = vmatprep.subr.mxu0 0.0
        %1575 = vmatpush1.msra.mxu0 0.0
        %1576 = vmatprep.subr.mxu0 0.0
        %1577 = vmatpush1.msra.mxu0 0.0
        %1578 = vmatprep.subr.mxu0 0.0
        %1579 = vmatpush1.msra.mxu0 0.0
        %1580 = vmatprep.subr.mxu0 0.0
        %1581 = vmatpush1.msra.mxu0 0.0
        %1582 = vmatprep.subr.mxu0 0.0
        %1583 = vmatpush1.msra.mxu0 0.0
        %1584 = vmatprep.subr.mxu0 0.0
        %1585 = vmatpush1.msra.mxu0 0.0
        %1586 = vmatprep.subr.mxu0 0.0
        %1587 = vmatpush1.msra.mxu0 0.0
        %1588 = vmatprep.subr.mxu0 0.0
        %1589 = vmatpush1.msra.mxu0 0.0
        %1590 = vmatprep.mubr.f32.mxu0 0.0
        %1591 = vmatmul.mubr.f32.gmra.mrb[0].mxu0 %v840
        %v1592 = vpop.f32.mrb[0].mxu0
        %v1593 = vadd.f32 0.0, %v1592
        %v1594 = vpop.f32.mrb[0].mxu0
        %1595 = vdwg.mxu0
        %v1596 = vld [vmem:[%s8] sm:$0xff]
        %v1597 = vld [vmem:[%s8 + $0x8] sm:$0xff]
        %v1598 = vlaneseq
        %v1599 = vshrl.u32 %v1598, 7
        %v1600 = vsub.s32 0, %v1599
        %v1601 = vrot.slane %v1593, %v1600
        %v1603 = vsel %vm582, %v1519, 0
        %1605 = vmatprep.subr.mxu0 0.0
        %1606 = vmatpush1.msra.mxu0 %v1596
        %1607 = vmatprep.subr.mxu0 0.0
        %1608 = vmatpush1.msra.mxu0 %v1597
        %1609 = vmatprep.subr.mxu0 0.0
        %1610 = vmatpush1.msra.mxu0 0.0
        %1611 = vmatprep.subr.mxu0 0.0
        %1612 = vmatpush1.msra.mxu0 0.0
        %1613 = vmatprep.subr.mxu0 0.0
        %1614 = vmatpush1.msra.mxu0 0.0
        %1615 = vmatprep.subr.mxu0 0.0
        %1616 = vmatpush1.msra.mxu0 0.0
        %1617 = vmatprep.subr.mxu0 0.0
        %1618 = vmatpush1.msra.mxu0 0.0
        %1619 = vmatprep.subr.mxu0 0.0
        %1620 = vmatpush1.msra.mxu0 0.0
        %1621 = vmatprep.subr.mxu0 0.0
        %1622 = vmatpush1.msra.mxu0 0.0
        %1623 = vmatprep.subr.mxu0 0.0
        %1624 = vmatpush1.msra.mxu0 0.0
        %1625 = vmatprep.subr.mxu0 0.0
        %1626 = vmatpush1.msra.mxu0 0.0
        %1627 = vmatprep.subr.mxu0 0.0
        %1628 = vmatpush1.msra.mxu0 0.0
        %1629 = vmatprep.subr.mxu0 0.0
        %1630 = vmatpush1.msra.mxu0 0.0
        %1631 = vmatprep.subr.mxu0 0.0
        %1632 = vmatpush1.msra.mxu0 0.0
        %1633 = vmatprep.subr.mxu0 0.0
        %1634 = vmatpush1.msra.mxu0 0.0
        %1635 = vmatprep.subr.mxu0 0.0
        %1636 = vmatpush1.msra.mxu0 0.0
        %1637 = vmatprep.subr.mxu0 0.0
        %1638 = vmatpush1.msra.mxu0 0.0
        %1639 = vmatprep.subr.mxu0 0.0
        %1640 = vmatpush1.msra.mxu0 0.0
        %1641 = vmatprep.subr.mxu0 0.0
        %1642 = vmatpush1.msra.mxu0 0.0
        %1643 = vmatprep.subr.mxu0 0.0
        %1644 = vmatpush1.msra.mxu0 0.0
        %1645 = vmatprep.subr.mxu0 0.0
        %1646 = vmatpush1.msra.mxu0 0.0
        %1647 = vmatprep.subr.mxu0 0.0
        %1648 = vmatpush1.msra.mxu0 0.0
        %1649 = vmatprep.subr.mxu0 0.0
        %1650 = vmatpush1.msra.mxu0 0.0
        %1651 = vmatprep.subr.mxu0 0.0
        %1652 = vmatpush1.msra.mxu0 0.0
        %1653 = vmatprep.subr.mxu0 0.0
        %1654 = vmatpush1.msra.mxu0 0.0
        %1655 = vmatprep.subr.mxu0 0.0
        %1656 = vmatpush1.msra.mxu0 0.0
        %1657 = vmatprep.subr.mxu0 0.0
        %1658 = vmatpush1.msra.mxu0 0.0
        %1659 = vmatprep.subr.mxu0 0.0
        %1660 = vmatpush1.msra.mxu0 0.0
        %1661 = vmatprep.subr.mxu0 0.0
        %1662 = vmatpush1.msra.mxu0 0.0
        %1663 = vmatprep.subr.mxu0 0.0
        %1664 = vmatpush1.msra.mxu0 0.0
        %1665 = vmatprep.subr.mxu0 0.0
        %1666 = vmatpush1.msra.mxu0 0.0
        %1667 = vmatprep.subr.mxu0 0.0
        %1668 = vmatpush1.msra.mxu0 0.0
        %1669 = vmatprep.mubr.f32.mxu0 0.0
        %1670 = vmatmul.mubr.f32.gmra.mrb[0].mxu0 %v1603
        %v1671 = vpop.f32.mrb[0].mxu0
        %v1672 = vadd.f32 %v1601, %v1671
        %v1673 = vpop.f32.mrb[0].mxu0
        %1674 = vdwg.mxu0
        %v1675 = vld [vmem:[%s10] sm:$0x1]
        %v1677 = vlaneseq
        %v1678 = vshrl.u32 %v1677, 7
        %v1679 = vsub.s32 0, %v1678
        %v1680 = vrot.slane %v1675, %v1679
        %v1682 = vadd.f32 %v1672, %v1680
        %v1683 = vxor.u32 %v1682, 2147483648
        %v1684 = vmul.f32 %v1683, 1.442695
        %v1685 = vpow.pop %v1684
        %v1686 = vadd.f32 %v1685, 1.0
        %v1687 = vrcp.pop %v1686
        %v1688 = vmul.f32 1.0, %v1687
        %1690 = vrot.lane.b32.xlu0 %v1682, 32
        %v1691 = vpop.permute.xlu0 %1690
        %v1693 = vmul.f32 %v1688, %v1691
        %1695 = vrot.lane.b32.xlu0 %v1693, 64
        %v1696 = vpop.permute.xlu0 %1695
        %v1698 = vadd.f32 %v1682, %v1696
        %v1699 = vtanh.pop %v1698
        %v1700 = vsub.f32 1.0, %v1688
        %1702 = vrot.lane.b32.xlu0 %v1699, 96
        %v1703 = vpop.permute.xlu0 %1702
        %v1705 = vmul.f32 %v1700, %v1703
        %1706 = vrot.lane.b32.xlu0 %v660, 32
        %v1707 = vpop.permute.xlu0 %1706
        %v1709 = vmul.f32 %v1688, %v1707
        %v1710 = vadd.f32 %v1705, %v1709
        %vm1711 = vcmask 523520
        %v1712 = vsel %vm1711, %v1710, 0.0
        %v1713 = vrot.slane %v1712, 4
        %v1714 = vadd.f32 %v1712, %v1713
        %v1715 = vrot.slane %v1714, 2
        %v1716 = vadd.f32 %v1714, %v1715
        %v1717 = vrot.slane %v1716, 1
        %v1718 = vadd.f32 %v1716, %v1717
        %v1719 = vmul.f32 %v1718, 0.125
        %1721 = vrot.lane.b32.xlu0 %v1719, 96
        %v1722 = vpop.permute.xlu0 %1721
        %vm1724 = vcmask 253952
        %1725 = vst.msk [vmem:[#allocation3] sm:$0x1] %vm1724, %v1722
        %1726 = vst.msk [vmem:[#allocation15] sm:$0x1] %vm1724, %v1722
        %s1727 = sand.u32 %s324, 1
        %s1728 = scalar_lea.sflag [#allocation6], %s1727
        %s1729 = sand.u32 %s324, 1
        %s1730 = smul.addr %s1729, 8
        %s1731 = scalar_lea.vmem [#allocation14], %s1730
        // Predicated region
        $region101: #{z_encoder_forward.1} parent=71 // pred_check
          %p1732 = pneg %p334
        $region102: #{z_encoder_forward.1} parent=71 // pred_check_branch
          %1734 = sbr.rel (%p1732) target = $region104
        $region103: #{z_encoder_forward.1} parent=71 // pred_region
          %s1736 = ssub.s32 128, 128
          %1737 = vsyncadd %s1728, %s1736
          %s1738 = smul.addr %s33, 128
          %s1739 = scalar_lea.hbm %s13, %s1738
          %s1741 = sshll.u32 %s1731, 4
          %s1742 = int_to_ptr.vmem [resolvable:$true] %s1741
          %1744 = dma.vmem_to_hbm [thread:$0]  %s1742, 128, %s1739, %s1728
        $region104: #{z_encoder_forward.1} parent=71 // pred_fallthru
          _
        // Predicated region
        $region105: #{z_encoder_forward.1} parent=71 // pred_check
          %p1745 = pneg %p355
        $region106: #{z_encoder_forward.1} parent=71 // pred_check_branch
          %1747 = sbr.rel (%p1745) target = $region108
        $region107: #{z_encoder_forward.1} parent=71 // pred_region
          %s1749 = ssub.s32 16, 16
          %1750 = vsyncadd [#allocation16], %s1749
          %s1752 = sshll.u32 [#allocation15], 4
          %s1753 = int_to_ptr.vmem [resolvable:$true] %s1752
          %1755 = dma.vmem_to_hbm [thread:$0]  %s1753, 16, %s14, [#allocation16]
        $region108: #{z_encoder_forward.1} parent=71 // pred_fallthru
          _
        // Predicated region
        $region109: #{z_encoder_forward.1} parent=71 // pred_check
          %p1756 = pneg %p355
        $region110: #{z_encoder_forward.1} parent=71 // pred_check_branch
          %1758 = sbr.rel (%p1756) target = $region112
        $region111: #{z_encoder_forward.1} parent=71 // pred_region
          %1759 = dma.done [#allocation16], 16
        $region112: #{z_encoder_forward.1} parent=71 // pred_fallthru
          _
      $region72: #{z_encoder_forward.1} parent=5 // pred_fallthru
        _
      %p1760 = scmp.le.s32.totalorder 2, %s28
      // Predicated region
      $region113: #{z_encoder_forward.1} parent=5 // pred_check
        %p1761 = pneg %p1760
      $region114: #{z_encoder_forward.1} parent=5 // pred_check_branch
        %1763 = sbr.rel (%p1761) target = $region116
      $region115: #{z_encoder_forward.1} parent=5 // pred_region
        %s1764 = ssub.s32 %s28, 2
        // Predicated region
        $region117: #{z_encoder_forward.1} parent=115 // pred_check
          %p1765 = pneg %p340
        $region118: #{z_encoder_forward.1} parent=115 // pred_check_branch
          %1767 = sbr.rel (%p1765) target = $region120
        $region119: #{z_encoder_forward.1} parent=115 // pred_region
          %s1768 = sand.u32 %s325, 1
          %s1769 = scalar_lea.sflag [#allocation6], %s1768
          %s1770 = sand.u32 %s325, 1
          %s1771 = smul.addr %s1770, 8
          %s1772 = scalar_lea.vmem [#allocation14], %s1771
          %1773 = dma.done %s1769, 128
        $region120: #{z_encoder_forward.1} parent=115 // pred_fallthru
          _
      $region116: #{z_encoder_forward.1} parent=5 // pred_fallthru
        _
    $region6: #{z_encoder_forward.1} parent=1 // loop_footer
      %s32 = sadd.s32 1, %s28
    $region7: #{z_encoder_forward.1} parent=1 // loop_footer_branch
      %27 = sbr.rel target = $region3
    $region8: #{z_encoder_forward.1} parent=1 // loop_exit
      _
    %1774 = vsyncpa [#allocation5], 1
    %s1775 = scalar_lea.sflag [#allocation5], 1
    %1776 = vsyncpa %s1775, 1
    %1777 = vsyncpa [#allocation8], 1
    %1778 = vsyncpa [#allocation11], 1
    %1779 = vsyncpa [#allocation6], 1
    %s1780 = scalar_lea.sflag [#allocation6], 1
    %1781 = vsyncpa %s1780, 1
    %1782 = vsyncpa [#allocation16], 1

</llo_original>
